<compile_context>
chip_gen: v7x
topology: tpu7x:2x2x1
jax: 0.10.0
libtpu: 0.0.40
codegen_flags: <defaults>
</compile_context>

<pallas_src>
import functools

import jax
import jax.numpy as jnp
from jax.experimental import pallas as pl
from jax.experimental.pallas import tpu as pltpu


def _round_up(x: int, m: int) -> int:
    return (x + m - 1) // m * m


# ----------------------------------------------------------------------------
# Kernel
# ----------------------------------------------------------------------------
def _dynamic_model_kernel(s_ref, a_ref,
                          w1s_ref, w1a_ref, b1_ref,
                          w2_ref, b2_ref,
                          w3_ref, b3_ref,
                          w4_ref, b4_ref,
                          out_ref):
    """One batch tile: fc_1 (split-weight concat) + relu, fc_2/3 + relu, fc_4."""
    # fc_1: x @ W1 == state @ W1[:d_s] + action @ W1[d_s:]  (no concat in HBM).
    h = jnp.dot(s_ref[...].astype(w1s_ref.dtype), w1s_ref[...],
                preferred_element_type=jnp.float32)
    h += jnp.dot(a_ref[...].astype(w1a_ref.dtype), w1a_ref[...],
                 preferred_element_type=jnp.float32)
    h = jnp.maximum(h + b1_ref[...], 0.0)

    # fc_2 + relu
    h = jnp.dot(h.astype(w2_ref.dtype), w2_ref[...],
                preferred_element_type=jnp.float32)
    h = jnp.maximum(h + b2_ref[...], 0.0)

    # fc_3 + relu
    h = jnp.dot(h.astype(w3_ref.dtype), w3_ref[...],
                preferred_element_type=jnp.float32)
    h = jnp.maximum(h + b3_ref[...], 0.0)

    # fc_4 (no activation). Narrow last dim -> masked vst; cheaper than the
    # lane-pad + wrapper-slice round trip at these sizes.
    out = jnp.dot(h.astype(w4_ref.dtype), w4_ref[...],
                  preferred_element_type=jnp.float32) + b4_ref[...]
    out_ref[...] = out.astype(out_ref.dtype)


def _resident_spec(shape):
    """Full-array block, constant index_map (stays VMEM-resident across steps).

    ndim bound via default arg to avoid the late-binding-lambda trap.
    """
    nd = len(shape)
    return pl.BlockSpec(shape, lambda i, _nd=nd: (0,) * _nd)


# ----------------------------------------------------------------------------
# One-time parameter packing (hoisted out of the forward hot path)
# ----------------------------------------------------------------------------
def prepare_params(params, input_state_dim, weight_dtype=None):
    """Pack DynamicModel params once for the Pallas forward.

    params: [(w1, b1), (w2, b2), (w3, b3), (w4, b4)], w as (in, out).
    weight_dtype: e.g. jnp.bfloat16 on v6e/v7x (biases stay f32).
    """
    (w1, b1), (w2, b2), (w3, b3), (w4, b4) = params

    def cast_w(w):
        return w.astype(weight_dtype) if weight_dtype is not None else w

    return dict(
        w1s=cast_w(w1[:input_state_dim, :]),
        w1a=cast_w(w1[input_state_dim:, :]),
        b1=b1.astype(jnp.float32).reshape(1, -1),
        w2=cast_w(w2), b2=b2.astype(jnp.float32).reshape(1, -1),
        w3=cast_w(w3), b3=b3.astype(jnp.float32).reshape(1, -1),
        w4=cast_w(w4), b4=b4.astype(jnp.float32).reshape(1, -1),
    )


# ----------------------------------------------------------------------------
# Forward
# ----------------------------------------------------------------------------
def _choose_batch_tile(batch, *, max_tm=512, min_tiles=1):
    """Largest 8-multiple tile <= max_tm giving at least `min_tiles` grid steps.

    min_tiles=1 -> single tile for small B (best on v5e/v6e, 1 TensorCore).
    min_tiles=2 -> even split for v7x (2 TensorCores, grid axis is "parallel").
    """
    tm = _round_up(pl.cdiv(batch, max(min_tiles, 1)), 8)
    return max(8, min(tm, max_tm, _round_up(batch, 8)))


@functools.partial(jax.jit, static_argnames=("tm",))
def _dynamic_model_forward_impl(state, action, packed, *, tm):
    B, d_s = state.shape
    _, d_a = action.shape
    hidden = packed["w2"].shape[0]
    out_dim = packed["w4"].shape[1]

    grid = (pl.cdiv(B, tm),)   # partial last block is masked on writeback

    in_specs = [
        pl.BlockSpec((tm, d_s), lambda i: (i, 0)),
        pl.BlockSpec((tm, d_a), lambda i: (i, 0)),
        _resident_spec(packed["w1s"].shape),
        _resident_spec(packed["w1a"].shape),
        _resident_spec(packed["b1"].shape),
        _resident_spec(packed["w2"].shape),
        _resident_spec(packed["b2"].shape),
        _resident_spec(packed["w3"].shape),
        _resident_spec(packed["b3"].shape),
        _resident_spec(packed["w4"].shape),
        _resident_spec(packed["b4"].shape),
    ]
    out_spec = pl.BlockSpec((tm, out_dim), lambda i: (i, 0))

    return pl.pallas_call(
        _dynamic_model_kernel,
        out_shape=jax.ShapeDtypeStruct((B, out_dim), jnp.float32),
        grid=grid,
        in_specs=in_specs,
        out_specs=out_spec,
        compiler_params=pltpu.CompilerParams(
            dimension_semantics=("parallel",)),
    )(state, action,
      packed["w1s"], packed["w1a"], packed["b1"],
      packed["w2"], packed["b2"],
      packed["w3"], packed["b3"],
      packed["w4"], packed["b4"])


def dynamic_model_forward(state, action, packed, *, tm=None,
                          max_tm=512, min_tiles=1):
    """Pallas DynamicModel.forward.

    state: (B, input_state_dim), action: (B, action_dim),
    packed: output of prepare_params(). Returns (B, output_state_dim) f32.
    Set min_tiles=2 on v7x so both TensorCores get work.
    """
    if tm is None:
        tm = _choose_batch_tile(state.shape[0], max_tm=max_tm,
                                min_tiles=min_tiles)
    return _dynamic_model_forward_impl(state, action, packed, tm=tm)


# ----------------------------------------------------------------------------
# Init + pure-JAX reference
# ----------------------------------------------------------------------------
def init_dynamic_model_params(key, input_state_dim, action_dim,
                              output_state_dim, hidden_dim,
                              dtype=jnp.float32):
    """nn.Linear-style U(-1/sqrt(fan_in), 1/sqrt(fan_in)); w stored (in, out)."""
    dims_in = [input_state_dim + action_dim, hidden_dim, hidden_dim, hidden_dim]
    dims_out = [hidden_dim, hidden_dim, hidden_dim, output_state_dim]
    params = []
    for din, dout in zip(dims_in, dims_out):
        kw, kb, key = jax.random.split(key, 3)
        bound = 1.0 / jnp.sqrt(jnp.float32(din))
        w = jax.random.uniform(kw, (din, dout), jnp.float32, -bound, bound)
        b = jax.random.uniform(kb, (dout,), jnp.float32, -bound, bound)
        params.append((w.astype(dtype), b.astype(dtype)))
    return params


def dynamic_model_reference(state, action, params):
    """Pure-JAX reference mirroring the PyTorch forward."""
    x = jnp.concatenate((state, action), axis=-1)
    (w1, b1), (w2, b2), (w3, b3), (w4, b4) = params
    h = jnp.maximum(x @ w1 + b1, 0.0)
    h = jnp.maximum(h @ w2 + b2, 0.0)
    h = jnp.maximum(h @ w3 + b3, 0.0)
    return h @ w4 + b4


if __name__ == "__main__":
    # Small shapes consistent with DynamicModel.forward. hidden=256 fills the
    # 256-wide MXU on v6e/v7x; B=200 -> tm=200 (multiple of 8), single-tile
    # grid, no padding or post-slicing anywhere.
    batch = 200
    input_state_dim = 8
    action_dim = 4
    output_state_dim = 8
    hidden_dim = 256

    key = jax.random.PRNGKey(0)
    k_s, k_a, k_p = jax.random.split(key, 3)

    state = jax.random.normal(k_s, (batch, input_state_dim), jnp.float32)
    action = jax.random.normal(k_a, (batch, action_dim), jnp.float32)

    params = init_dynamic_model_params(
        k_p, input_state_dim, action_dim, output_state_dim, hidden_dim)

    # One-time packing (weight split / bias reshape / optional bf16 cast).
    # For v6e/v7x deployment use weight_dtype=jnp.bfloat16 (loosen tolerance).
    packed = prepare_params(params, input_state_dim, weight_dtype=None)

    out = dynamic_model_forward(state, action, packed)
    out = jax.block_until_ready(out)

    out_ref = dynamic_model_reference(state, action, params)
    assert out.shape == (batch, output_state_dim), out.shape
    assert jnp.allclose(out, out_ref, atol=1e-4, rtol=1e-4), (out, out_ref)

    print("KERNEL_OK")
</pallas_src>

<mosaic_0001>
module attributes {stable_mosaic.version = 11 : i64} {
  func.func @_dynamic_model_kernel(%arg0: i32, %arg1: memref<200x8xf32, #tpu.memory_space<vmem>>, %arg2: memref<200x4xf32, #tpu.memory_space<vmem>>, %arg3: memref<8x256xf32, #tpu.memory_space<vmem>>, %arg4: memref<4x256xf32, #tpu.memory_space<vmem>>, %arg5: memref<1x256xf32, #tpu.memory_space<vmem>>, %arg6: memref<256x256xf32, #tpu.memory_space<vmem>>, %arg7: memref<1x256xf32, #tpu.memory_space<vmem>>, %arg8: memref<256x256xf32, #tpu.memory_space<vmem>>, %arg9: memref<1x256xf32, #tpu.memory_space<vmem>>, %arg10: memref<256x8xf32, #tpu.memory_space<vmem>>, %arg11: memref<1x8xf32, #tpu.memory_space<vmem>>, %arg12: memref<200x8xf32, #tpu.memory_space<vmem>>) attributes {dimension_semantics = [#tpu.dimension_semantics<parallel>], iteration_bounds = array<i64: 1>, scalar_prefetch = 0 : i64, scratch_operands = 0 : i64, tpu.core_type = #tpu.core_type<tc>, window_params = [{transform_indices = @transform_0, window_bounds = array<i64: 200, 8>}, {transform_indices = @transform_1, window_bounds = array<i64: 200, 4>}, {pipeline_mode = #tpu.pipeline_mode<synchronous>, transform_indices = @transform_2, window_bounds = array<i64: 8, 256>}, {pipeline_mode = #tpu.pipeline_mode<synchronous>, transform_indices = @transform_3, window_bounds = array<i64: 4, 256>}, {pipeline_mode = #tpu.pipeline_mode<synchronous>, transform_indices = @transform_4, window_bounds = array<i64: 1, 256>}, {pipeline_mode = #tpu.pipeline_mode<synchronous>, transform_indices = @transform_5, window_bounds = array<i64: 256, 256>}, {pipeline_mode = #tpu.pipeline_mode<synchronous>, transform_indices = @transform_6, window_bounds = array<i64: 1, 256>}, {pipeline_mode = #tpu.pipeline_mode<synchronous>, transform_indices = @transform_7, window_bounds = array<i64: 256, 256>}, {pipeline_mode = #tpu.pipeline_mode<synchronous>, transform_indices = @transform_8, window_bounds = array<i64: 1, 256>}, {pipeline_mode = #tpu.pipeline_mode<synchronous>, transform_indices = @transform_9, window_bounds = array<i64: 256, 8>}, {pipeline_mode = #tpu.pipeline_mode<synchronous>, transform_indices = @transform_10, window_bounds = array<i64: 1, 8>}, {transform_indices = @transform_11, window_bounds = array<i64: 200, 8>}]} {
    %c0 = arith.constant 0 : index
    %c0_0 = arith.constant 0 : index
    %0 = vector.load %arg1[%c0, %c0_0] : memref<200x8xf32, #tpu.memory_space<vmem>>, vector<200x8xf32>
    %c0_1 = arith.constant 0 : index
    %c0_2 = arith.constant 0 : index
    %1 = vector.load %arg3[%c0_1, %c0_2] : memref<8x256xf32, #tpu.memory_space<vmem>>, vector<8x256xf32>
    %cst = arith.constant dense<0.000000e+00> : vector<200x256xf32>
    %2 = tpu.matmul %0, %1, %cst {dimension_numbers = #tpu.dot_dimension_numbers<[1], [0], [0], [1], [0, 0, 1, 1], [], []>} : vector<200x8xf32>, vector<8x256xf32>, vector<200x256xf32> -> vector<200x256xf32>
    %c0_3 = arith.constant 0 : index
    %c0_4 = arith.constant 0 : index
    %3 = vector.load %arg2[%c0_3, %c0_4] : memref<200x4xf32, #tpu.memory_space<vmem>>, vector<200x4xf32>
    %c0_5 = arith.constant 0 : index
    %c0_6 = arith.constant 0 : index
    %4 = vector.load %arg4[%c0_5, %c0_6] : memref<4x256xf32, #tpu.memory_space<vmem>>, vector<4x256xf32>
    %cst_7 = arith.constant dense<0.000000e+00> : vector<200x256xf32>
    %5 = tpu.matmul %3, %4, %cst_7 {dimension_numbers = #tpu.dot_dimension_numbers<[1], [0], [0], [1], [0, 0, 1, 1], [], []>} : vector<200x4xf32>, vector<4x256xf32>, vector<200x256xf32> -> vector<200x256xf32>
    %6 = arith.addf %2, %5 : vector<200x256xf32>
    %c0_8 = arith.constant 0 : index
    %c0_9 = arith.constant 0 : index
    %7 = vector.load %arg5[%c0_8, %c0_9] : memref<1x256xf32, #tpu.memory_space<vmem>>, vector<1x256xf32>
    %8 = vector.broadcast %7 : vector<1x256xf32> to vector<200x256xf32>
    %9 = arith.addf %6, %8 : vector<200x256xf32>
    %cst_10 = arith.constant 0.000000e+00 : f32
    %10 = vector.broadcast %cst_10 : f32 to vector<200x256xf32>
    %11 = arith.maximumf %9, %10 : vector<200x256xf32>
    %c0_11 = arith.constant 0 : index
    %c0_12 = arith.constant 0 : index
    %12 = vector.load %arg6[%c0_11, %c0_12] : memref<256x256xf32, #tpu.memory_space<vmem>>, vector<256x256xf32>
    %cst_13 = arith.constant dense<0.000000e+00> : vector<200x256xf32>
    %13 = tpu.matmul %11, %12, %cst_13 {dimension_numbers = #tpu.dot_dimension_numbers<[1], [0], [0], [1], [0, 0, 1, 1], [], []>} : vector<200x256xf32>, vector<256x256xf32>, vector<200x256xf32> -> vector<200x256xf32>
    %c0_14 = arith.constant 0 : index
    %c0_15 = arith.constant 0 : index
    %14 = vector.load %arg7[%c0_14, %c0_15] : memref<1x256xf32, #tpu.memory_space<vmem>>, vector<1x256xf32>
    %15 = vector.broadcast %14 : vector<1x256xf32> to vector<200x256xf32>
    %16 = arith.addf %13, %15 : vector<200x256xf32>
    %cst_16 = arith.constant 0.000000e+00 : f32
    %17 = vector.broadcast %cst_16 : f32 to vector<200x256xf32>
    %18 = arith.maximumf %16, %17 : vector<200x256xf32>
    %c0_17 = arith.constant 0 : index
    %c0_18 = arith.constant 0 : index
    %19 = vector.load %arg8[%c0_17, %c0_18] : memref<256x256xf32, #tpu.memory_space<vmem>>, vector<256x256xf32>
    %cst_19 = arith.constant dense<0.000000e+00> : vector<200x256xf32>
    %20 = tpu.matmul %18, %19, %cst_19 {dimension_numbers = #tpu.dot_dimension_numbers<[1], [0], [0], [1], [0, 0, 1, 1], [], []>} : vector<200x256xf32>, vector<256x256xf32>, vector<200x256xf32> -> vector<200x256xf32>
    %c0_20 = arith.constant 0 : index
    %c0_21 = arith.constant 0 : index
    %21 = vector.load %arg9[%c0_20, %c0_21] : memref<1x256xf32, #tpu.memory_space<vmem>>, vector<1x256xf32>
    %22 = vector.broadcast %21 : vector<1x256xf32> to vector<200x256xf32>
    %23 = arith.addf %20, %22 : vector<200x256xf32>
    %cst_22 = arith.constant 0.000000e+00 : f32
    %24 = vector.broadcast %cst_22 : f32 to vector<200x256xf32>
    %25 = arith.maximumf %23, %24 : vector<200x256xf32>
    %c0_23 = arith.constant 0 : index
    %c0_24 = arith.constant 0 : index
    %26 = vector.load %arg10[%c0_23, %c0_24] : memref<256x8xf32, #tpu.memory_space<vmem>>, vector<256x8xf32>
    %cst_25 = arith.constant dense<0.000000e+00> : vector<200x8xf32>
    %27 = tpu.matmul %25, %26, %cst_25 {dimension_numbers = #tpu.dot_dimension_numbers<[1], [0], [0], [1], [0, 0, 1, 1], [], []>} : vector<200x256xf32>, vector<256x8xf32>, vector<200x8xf32> -> vector<200x8xf32>
    %c0_26 = arith.constant 0 : index
    %c0_27 = arith.constant 0 : index
    %28 = vector.load %arg11[%c0_26, %c0_27] : memref<1x8xf32, #tpu.memory_space<vmem>>, vector<1x8xf32>
    %29 = vector.broadcast %28 : vector<1x8xf32> to vector<200x8xf32>
    %30 = arith.addf %27, %29 : vector<200x8xf32>
    %c0_28 = arith.constant 0 : index
    %c0_29 = arith.constant 0 : index
    %31 = vector.load %arg12[%c0_28, %c0_29] : memref<200x8xf32, #tpu.memory_space<vmem>>, vector<200x8xf32>
    tpu.vector_store %arg12[%c0_28, %c0_29], %30 {strides = array<i32>} : memref<200x8xf32, #tpu.memory_space<vmem>>, vector<200x8xf32>,
    return
  }
  func.func @transform_0(%arg0: i32) -> (i32, i32) {
    %c0_i32 = arith.constant 0 : i32
    %c0_i32_0 = arith.constant 0 : i32
    return %arg0, %c0_i32 : i32, i32
  }
  func.func @transform_1(%arg0: i32) -> (i32, i32) {
    %c0_i32 = arith.constant 0 : i32
    %c0_i32_0 = arith.constant 0 : i32
    return %arg0, %c0_i32 : i32, i32
  }
  func.func @transform_2(%arg0: i32) -> (i32, i32) {
    %c0_i32 = arith.constant 0 : i32
    %c0_i32_0 = arith.constant 0 : i32
    %c0_i32_1 = arith.constant 0 : i32
    return %c0_i32, %c0_i32_0 : i32, i32
  }
  func.func @transform_3(%arg0: i32) -> (i32, i32) {
    %c0_i32 = arith.constant 0 : i32
    %c0_i32_0 = arith.constant 0 : i32
    %c0_i32_1 = arith.constant 0 : i32
    return %c0_i32, %c0_i32_0 : i32, i32
  }
  func.func @transform_4(%arg0: i32) -> (i32, i32) {
    %c0_i32 = arith.constant 0 : i32
    %c0_i32_0 = arith.constant 0 : i32
    %c0_i32_1 = arith.constant 0 : i32
    return %c0_i32, %c0_i32_0 : i32, i32
  }
  func.func @transform_5(%arg0: i32) -> (i32, i32) {
    %c0_i32 = arith.constant 0 : i32
    %c0_i32_0 = arith.constant 0 : i32
    %c0_i32_1 = arith.constant 0 : i32
    return %c0_i32, %c0_i32_0 : i32, i32
  }
  func.func @transform_6(%arg0: i32) -> (i32, i32) {
    %c0_i32 = arith.constant 0 : i32
    %c0_i32_0 = arith.constant 0 : i32
    %c0_i32_1 = arith.constant 0 : i32
    return %c0_i32, %c0_i32_0 : i32, i32
  }
  func.func @transform_7(%arg0: i32) -> (i32, i32) {
    %c0_i32 = arith.constant 0 : i32
    %c0_i32_0 = arith.constant 0 : i32
    %c0_i32_1 = arith.constant 0 : i32
    return %c0_i32, %c0_i32_0 : i32, i32
  }
  func.func @transform_8(%arg0: i32) -> (i32, i32) {
    %c0_i32 = arith.constant 0 : i32
    %c0_i32_0 = arith.constant 0 : i32
    %c0_i32_1 = arith.constant 0 : i32
    return %c0_i32, %c0_i32_0 : i32, i32
  }
  func.func @transform_9(%arg0: i32) -> (i32, i32) {
    %c0_i32 = arith.constant 0 : i32
    %c0_i32_0 = arith.constant 0 : i32
    %c0_i32_1 = arith.constant 0 : i32
    return %c0_i32, %c0_i32_0 : i32, i32
  }
  func.func @transform_10(%arg0: i32) -> (i32, i32) {
    %c0_i32 = arith.constant 0 : i32
    %c0_i32_0 = arith.constant 0 : i32
    %c0_i32_1 = arith.constant 0 : i32
    return %c0_i32, %c0_i32_0 : i32, i32
  }
  func.func @transform_11(%arg0: i32) -> (i32, i32) {
    %c0_i32 = arith.constant 0 : i32
    %c0_i32_0 = arith.constant 0 : i32
    return %arg0, %c0_i32 : i32, i32
  }
}

</mosaic_0001>

<llo_original>
// kernel: _dynamic_model_forward_impl.1
$region0: #{_dynamic_model_forward_impl.1}
  #allocation0 [shape = 'u32[]', space=smem, size = 0x4, offset = 0x4, fixed_abs, tag = 'smem constant byte address 0x4 - core index']
  #allocation1 [shape = 'u32[144,128]{1,0:T(1,128)}', space=vmem, size = 0x12000, scoped, tag = 'internal scratch']
  %s0 = inlined_call_operand.vmem [shape: f32[200,8], index: 0, kind: input, shape index: {}]
  %s1 = inlined_call_operand.vmem [shape: f32[200,4], index: 1, kind: input, shape index: {}]
  %s2 = inlined_call_operand.vmem [shape: f32[8,256], index: 2, kind: input, shape index: {}]
  %s3 = inlined_call_operand.vmem [shape: f32[4,256], index: 3, kind: input, shape index: {}]
  %s4 = inlined_call_operand.vmem [shape: f32[1,256], index: 4, kind: input, shape index: {}]
  %s5 = inlined_call_operand.vmem [shape: f32[256,256], index: 5, kind: input, shape index: {}]
  %s6 = inlined_call_operand.vmem [shape: f32[1,256], index: 6, kind: input, shape index: {}]
  %s7 = inlined_call_operand.hbm [shape: f32[256,256], index: 7, kind: input, shape index: {}]
  %s8 = inlined_call_operand.vmem [shape: f32[1,256], index: 8, kind: input, shape index: {}]
  %s9 = inlined_call_operand.vmem [shape: f32[256,8], index: 9, kind: input, shape index: {}]
  %s10 = inlined_call_operand.vmem [shape: f32[1,8], index: 10, kind: input, shape index: {}]
  %s11 = inlined_call_operand.vmem [shape: f32[200,8], index: 11, kind: output, shape index: {}]
  %s12 = sld [smem:[#allocation0]]
  $region58: #{_dynamic_model_forward_impl.1} parent=0
    _
  %s14 = ssub.s32 1, %s12
  %s15 = scalar_select 0, %s14, %s12
  $region1: #{_dynamic_model_forward_impl.1} parent=0
    #allocation2 [shape = 'u8[262144]{0}', space=vmem, size = 0x40000, scoped, tag = 'input window, operand 7, single buffered']
    #allocation3 [shape = 's32[1]{0}', space=sflag, size = 0x4, scoped, tag = 'scoped memory for _dynamic_model_forward_impl.1']
    %16 = vsyncpa [#allocation3], 0
    // Predicated region
    $region2: #{_dynamic_model_forward_impl.1} parent=1 // pred_check
      _
    $region3: #{_dynamic_model_forward_impl.1} parent=1 // pred_check_branch
      %18 = sbr.rel (0) target = $region5
    $region4: #{_dynamic_model_forward_impl.1} parent=1 // pred_region
      _
    $region5: #{_dynamic_model_forward_impl.1} parent=1 // pred_fallthru
      _
    // Predicated region
    $region6: #{_dynamic_model_forward_impl.1} parent=1 // pred_check
      _
    $region7: #{_dynamic_model_forward_impl.1} parent=1 // pred_check_branch
      %20 = sbr.rel (0) target = $region9
    $region8: #{_dynamic_model_forward_impl.1} parent=1 // pred_region
      _
    $region9: #{_dynamic_model_forward_impl.1} parent=1 // pred_fallthru
      _
    // Predicated region
    $region10: #{_dynamic_model_forward_impl.1} parent=1 // pred_check
      _
    $region11: #{_dynamic_model_forward_impl.1} parent=1 // pred_check_branch
      %22 = sbr.rel (0) target = $region13
    $region12: #{_dynamic_model_forward_impl.1} parent=1 // pred_region
      _
    $region13: #{_dynamic_model_forward_impl.1} parent=1 // pred_fallthru
      _
    // Predicated region
    $region14: #{_dynamic_model_forward_impl.1} parent=1 // pred_check
      _
    $region15: #{_dynamic_model_forward_impl.1} parent=1 // pred_check_branch
      %24 = sbr.rel (0) target = $region17
    $region16: #{_dynamic_model_forward_impl.1} parent=1 // pred_region
      _
    $region17: #{_dynamic_model_forward_impl.1} parent=1 // pred_fallthru
      _
    // Predicated region
    $region18: #{_dynamic_model_forward_impl.1} parent=1 // pred_check
      _
    $region19: #{_dynamic_model_forward_impl.1} parent=1 // pred_check_branch
      %26 = sbr.rel (0) target = $region21
    $region20: #{_dynamic_model_forward_impl.1} parent=1 // pred_region
      _
    $region21: #{_dynamic_model_forward_impl.1} parent=1 // pred_fallthru
      _
    // Predicated region
    $region22: #{_dynamic_model_forward_impl.1} parent=1 // pred_check
      _
    $region23: #{_dynamic_model_forward_impl.1} parent=1 // pred_check_branch
      %28 = sbr.rel (0) target = $region25
    $region24: #{_dynamic_model_forward_impl.1} parent=1 // pred_region
      _
    $region25: #{_dynamic_model_forward_impl.1} parent=1 // pred_fallthru
      _
    // Predicated region
    $region26: #{_dynamic_model_forward_impl.1} parent=1 // pred_check
      _
    $region27: #{_dynamic_model_forward_impl.1} parent=1 // pred_check_branch
      %30 = sbr.rel (0) target = $region29
    $region28: #{_dynamic_model_forward_impl.1} parent=1 // pred_region
      _
    $region29: #{_dynamic_model_forward_impl.1} parent=1 // pred_fallthru
      _
    // Predicated region
    $region30: #{_dynamic_model_forward_impl.1} parent=1 // pred_check
      _
    $region31: #{_dynamic_model_forward_impl.1} parent=1 // pred_check_branch
      %32 = sbr.rel (0) target = $region33
    $region32: #{_dynamic_model_forward_impl.1} parent=1 // pred_region
      %s34 = ssub.s32 8192, 8192
      %35 = vsyncadd [#allocation3], %s34
      %s36 = sshll.u32 [#allocation2], 4
      %s37 = int_to_ptr.vmem [resolvable:$true] %s36
      %42 = dma.hbm_to_vmem [thread:$0]  %s7, 8192, %s37, [#allocation3], 256, 256, 16
    $region33: #{_dynamic_model_forward_impl.1} parent=1 // pred_fallthru
      _
    // Predicated region
    $region34: #{_dynamic_model_forward_impl.1} parent=1 // pred_check
      _
    $region35: #{_dynamic_model_forward_impl.1} parent=1 // pred_check_branch
      %44 = sbr.rel (0) target = $region37
    $region36: #{_dynamic_model_forward_impl.1} parent=1 // pred_region
      _
    $region37: #{_dynamic_model_forward_impl.1} parent=1 // pred_fallthru
      _
    // Predicated region
    $region38: #{_dynamic_model_forward_impl.1} parent=1 // pred_check
      _
    $region39: #{_dynamic_model_forward_impl.1} parent=1 // pred_check_branch
      %46 = sbr.rel (0) target = $region41
    $region40: #{_dynamic_model_forward_impl.1} parent=1 // pred_region
      _
    $region41: #{_dynamic_model_forward_impl.1} parent=1 // pred_fallthru
      _
    // Predicated region
    $region42: #{_dynamic_model_forward_impl.1} parent=1 // pred_check
      _
    $region43: #{_dynamic_model_forward_impl.1} parent=1 // pred_check_branch
      %48 = sbr.rel (0) target = $region45
    $region44: #{_dynamic_model_forward_impl.1} parent=1 // pred_region
      _
    $region45: #{_dynamic_model_forward_impl.1} parent=1 // pred_fallthru
      _
    // Predicated region
    $region46: #{_dynamic_model_forward_impl.1} parent=1 // pred_check
      _
    $region47: #{_dynamic_model_forward_impl.1} parent=1 // pred_check_branch
      %50 = sbr.rel (0) target = $region49
    $region48: #{_dynamic_model_forward_impl.1} parent=1 // pred_region
      %51 = dma.done [#allocation3], 8192
    $region49: #{_dynamic_model_forward_impl.1} parent=1 // pred_fallthru
      _
    %v52 = vld [vmem:[%s0] sm:$0xff]
    %v53 = vld [vmem:[%s0 + $0x8] sm:$0xff]
    %v54 = vld [vmem:[%s0 + $0x10] sm:$0xff]
    %v55 = vld [vmem:[%s0 + $0x18] sm:$0xff]
    %v56 = vld [vmem:[%s0 + $0x20] sm:$0xff]
    %v57 = vld [vmem:[%s0 + $0x28] sm:$0xff]
    %v58 = vld [vmem:[%s0 + $0x30] sm:$0xff]
    %v59 = vld [vmem:[%s0 + $0x38] sm:$0xff]
    %v60 = vld [vmem:[%s0 + $0x40] sm:$0xff]
    %v61 = vld [vmem:[%s0 + $0x48] sm:$0xff]
    %v62 = vld [vmem:[%s0 + $0x50] sm:$0xff]
    %v63 = vld [vmem:[%s0 + $0x58] sm:$0xff]
    %v64 = vld [vmem:[%s0 + $0x60] sm:$0xff]
    %v65 = vld [vmem:[%s0 + $0x68] sm:$0xff]
    %v66 = vld [vmem:[%s0 + $0x70] sm:$0xff]
    %v67 = vld [vmem:[%s0 + $0x78] sm:$0xff]
    %v68 = vld [vmem:[%s0 + $0x80] sm:$0xff]
    %v69 = vld [vmem:[%s0 + $0x88] sm:$0xff]
    %v70 = vld [vmem:[%s0 + $0x90] sm:$0xff]
    %v71 = vld [vmem:[%s0 + $0x98] sm:$0xff]
    %v72 = vld [vmem:[%s0 + $0xa0] sm:$0xff]
    %v73 = vld [vmem:[%s0 + $0xa8] sm:$0xff]
    %v74 = vld [vmem:[%s0 + $0xb0] sm:$0xff]
    %v75 = vld [vmem:[%s0 + $0xb8] sm:$0xff]
    %v76 = vld [vmem:[%s0 + $0xc0] sm:$0xff]
    %v77 = vld [vmem:[%s2] sm:$0xff]
    %v78 = vld [vmem:[%s2 + $0x8] sm:$0xff]
    %v79 = vld [vmem:[%s1] sm:$0xff]
    %v80 = vld [vmem:[%s1 + $0x8] sm:$0xff]
    %v81 = vld [vmem:[%s1 + $0x10] sm:$0xff]
    %v82 = vld [vmem:[%s1 + $0x18] sm:$0xff]
    %v83 = vld [vmem:[%s1 + $0x20] sm:$0xff]
    %v84 = vld [vmem:[%s1 + $0x28] sm:$0xff]
    %v85 = vld [vmem:[%s1 + $0x30] sm:$0xff]
    %v86 = vld [vmem:[%s1 + $0x38] sm:$0xff]
    %v87 = vld [vmem:[%s1 + $0x40] sm:$0xff]
    %v88 = vld [vmem:[%s1 + $0x48] sm:$0xff]
    %v89 = vld [vmem:[%s1 + $0x50] sm:$0xff]
    %v90 = vld [vmem:[%s1 + $0x58] sm:$0xff]
    %v91 = vld [vmem:[%s1 + $0x60] sm:$0xff]
    %v92 = vld [vmem:[%s1 + $0x68] sm:$0xff]
    %v93 = vld [vmem:[%s1 + $0x70] sm:$0xff]
    %v94 = vld [vmem:[%s1 + $0x78] sm:$0xff]
    %v95 = vld [vmem:[%s1 + $0x80] sm:$0xff]
    %v96 = vld [vmem:[%s1 + $0x88] sm:$0xff]
    %v97 = vld [vmem:[%s1 + $0x90] sm:$0xff]
    %v98 = vld [vmem:[%s1 + $0x98] sm:$0xff]
    %v99 = vld [vmem:[%s1 + $0xa0] sm:$0xff]
    %v100 = vld [vmem:[%s1 + $0xa8] sm:$0xff]
    %v101 = vld [vmem:[%s1 + $0xb0] sm:$0xff]
    %v102 = vld [vmem:[%s1 + $0xb8] sm:$0xff]
    %v103 = vld [vmem:[%s1 + $0xc0] sm:$0xff]
    %v104 = vld [vmem:[%s3] sm:$0xff]
    %v106 = vcombine.high %v104, %v104
    %vm107 = vcmask 31744
    %v109 = vsel %vm107, %v79, 0
    %v112 = vsel %vm107, %v80, 0
    %v115 = vsel %vm107, %v81, 0
    %v118 = vsel %vm107, %v82, 0
    %v121 = vsel %vm107, %v83, 0
    %v124 = vsel %vm107, %v84, 0
    %v127 = vsel %vm107, %v85, 0
    %v130 = vsel %vm107, %v86, 0
    %v133 = vsel %vm107, %v87, 0
    %v136 = vsel %vm107, %v88, 0
    %v139 = vsel %vm107, %v89, 0
    %v142 = vsel %vm107, %v90, 0
    %v145 = vsel %vm107, %v91, 0
    %v148 = vsel %vm107, %v92, 0
    %v151 = vsel %vm107, %v93, 0
    %v154 = vsel %vm107, %v94, 0
    %v157 = vsel %vm107, %v95, 0
    %v160 = vsel %vm107, %v96, 0
    %v163 = vsel %vm107, %v97, 0
    %v166 = vsel %vm107, %v98, 0
    %v169 = vsel %vm107, %v99, 0
    %v172 = vsel %vm107, %v100, 0
    %v175 = vsel %vm107, %v101, 0
    %v178 = vsel %vm107, %v102, 0
    %v181 = vsel %vm107, %v103, 0
    %vm183 = vcmask 1043456
    %v184 = vsel %vm183, %v104, 0
    %v186 = vsel %vm183, %v106, 0
    %188 = vmatprep.subr.mxu0 %v186
    %189 = vmatpush1.msra.mxu0 %v184
    %190 = vmatprep.subr.mxu0 0.0
    %191 = vmatpush1.msra.mxu0 0.0
    %192 = vmatprep.subr.mxu0 0.0
    %193 = vmatpush1.msra.mxu0 0.0
    %194 = vmatprep.subr.mxu0 0.0
    %195 = vmatpush1.msra.mxu0 0.0
    %196 = vmatprep.subr.mxu0 0.0
    %197 = vmatpush1.msra.mxu0 0.0
    %198 = vmatprep.subr.mxu0 0.0
    %199 = vmatpush1.msra.mxu0 0.0
    %200 = vmatprep.subr.mxu0 0.0
    %201 = vmatpush1.msra.mxu0 0.0
    %202 = vmatprep.subr.mxu0 0.0
    %203 = vmatpush1.msra.mxu0 0.0
    %204 = vmatprep.subr.mxu0 0.0
    %205 = vmatpush1.msra.mxu0 0.0
    %206 = vmatprep.subr.mxu0 0.0
    %207 = vmatpush1.msra.mxu0 0.0
    %208 = vmatprep.subr.mxu0 0.0
    %209 = vmatpush1.msra.mxu0 0.0
    %210 = vmatprep.subr.mxu0 0.0
    %211 = vmatpush1.msra.mxu0 0.0
    %212 = vmatprep.subr.mxu0 0.0
    %213 = vmatpush1.msra.mxu0 0.0
    %214 = vmatprep.subr.mxu0 0.0
    %215 = vmatpush1.msra.mxu0 0.0
    %216 = vmatprep.subr.mxu0 0.0
    %217 = vmatpush1.msra.mxu0 0.0
    %218 = vmatprep.subr.mxu0 0.0
    %219 = vmatpush1.msra.mxu0 0.0
    %220 = vmatprep.subr.mxu0 0.0
    %221 = vmatpush1.msra.mxu0 0.0
    %222 = vmatprep.subr.mxu0 0.0
    %223 = vmatpush1.msra.mxu0 0.0
    %224 = vmatprep.subr.mxu0 0.0
    %225 = vmatpush1.msra.mxu0 0.0
    %226 = vmatprep.subr.mxu0 0.0
    %227 = vmatpush1.msra.mxu0 0.0
    %228 = vmatprep.subr.mxu0 0.0
    %229 = vmatpush1.msra.mxu0 0.0
    %230 = vmatprep.subr.mxu0 0.0
    %231 = vmatpush1.msra.mxu0 0.0
    %232 = vmatprep.subr.mxu0 0.0
    %233 = vmatpush1.msra.mxu0 0.0
    %234 = vmatprep.subr.mxu0 0.0
    %235 = vmatpush1.msra.mxu0 0.0
    %236 = vmatprep.subr.mxu0 0.0
    %237 = vmatpush1.msra.mxu0 0.0
    %238 = vmatprep.subr.mxu0 0.0
    %239 = vmatpush1.msra.mxu0 0.0
    %240 = vmatprep.subr.mxu0 0.0
    %241 = vmatpush1.msra.mxu0 0.0
    %242 = vmatprep.subr.mxu0 0.0
    %243 = vmatpush1.msra.mxu0 0.0
    %244 = vmatprep.subr.mxu0 0.0
    %245 = vmatpush1.msra.mxu0 0.0
    %246 = vmatprep.subr.mxu0 0.0
    %247 = vmatpush1.msra.mxu0 0.0
    %248 = vmatprep.subr.mxu0 0.0
    %249 = vmatpush1.msra.mxu0 0.0
    %250 = vmatprep.subr.mxu0 0.0
    %251 = vmatpush1.msra.mxu0 0.0
    %252 = vmatprep.mubr.f32.mxu0 0.0
    %253 = vmatmul.mubr.f32.gmra.mrb[0].mxu0 %v109
    %v254 = vpop.f32.mrb[0].mxu0
    %v255 = vadd.f32 0.0, %v254
    %v256 = vpop.f32.mrb[0].mxu0
    %v257 = vadd.f32 0.0, %v256
    %258 = vmatprep.mubr.f32.mxu0 0.0
    %259 = vmatmul.mubr.f32.gmra.mrb[0].mxu0 %v112
    %v260 = vpop.f32.mrb[0].mxu0
    %v261 = vadd.f32 0.0, %v260
    %v262 = vpop.f32.mrb[0].mxu0
    %v263 = vadd.f32 0.0, %v262
    %264 = vmatprep.mubr.f32.mxu0 0.0
    %265 = vmatmul.mubr.f32.gmra.mrb[0].mxu0 %v115
    %v266 = vpop.f32.mrb[0].mxu0
    %v267 = vadd.f32 0.0, %v266
    %v268 = vpop.f32.mrb[0].mxu0
    %v269 = vadd.f32 0.0, %v268
    %270 = vmatprep.mubr.f32.mxu0 0.0
    %271 = vmatmul.mubr.f32.gmra.mrb[0].mxu0 %v118
    %v272 = vpop.f32.mrb[0].mxu0
    %v273 = vadd.f32 0.0, %v272
    %v274 = vpop.f32.mrb[0].mxu0
    %v275 = vadd.f32 0.0, %v274
    %276 = vmatprep.mubr.f32.mxu0 0.0
    %277 = vmatmul.mubr.f32.gmra.mrb[0].mxu0 %v121
    %v278 = vpop.f32.mrb[0].mxu0
    %v279 = vadd.f32 0.0, %v278
    %v280 = vpop.f32.mrb[0].mxu0
    %v281 = vadd.f32 0.0, %v280
    %282 = vmatprep.mubr.f32.mxu0 0.0
    %283 = vmatmul.mubr.f32.gmra.mrb[0].mxu0 %v124
    %v284 = vpop.f32.mrb[0].mxu0
    %v285 = vadd.f32 0.0, %v284
    %v286 = vpop.f32.mrb[0].mxu0
    %v287 = vadd.f32 0.0, %v286
    %288 = vmatprep.mubr.f32.mxu0 0.0
    %289 = vmatmul.mubr.f32.gmra.mrb[0].mxu0 %v127
    %v290 = vpop.f32.mrb[0].mxu0
    %v291 = vadd.f32 0.0, %v290
    %v292 = vpop.f32.mrb[0].mxu0
    %v293 = vadd.f32 0.0, %v292
    %294 = vmatprep.mubr.f32.mxu0 0.0
    %295 = vmatmul.mubr.f32.gmra.mrb[0].mxu0 %v130
    %v296 = vpop.f32.mrb[0].mxu0
    %v297 = vadd.f32 0.0, %v296
    %v298 = vpop.f32.mrb[0].mxu0
    %v299 = vadd.f32 0.0, %v298
    %300 = vmatprep.mubr.f32.mxu0 0.0
    %301 = vmatmul.mubr.f32.gmra.mrb[0].mxu0 %v133
    %v302 = vpop.f32.mrb[0].mxu0
    %v303 = vadd.f32 0.0, %v302
    %v304 = vpop.f32.mrb[0].mxu0
    %v305 = vadd.f32 0.0, %v304
    %306 = vmatprep.mubr.f32.mxu0 0.0
    %307 = vmatmul.mubr.f32.gmra.mrb[0].mxu0 %v136
    %v308 = vpop.f32.mrb[0].mxu0
    %v309 = vadd.f32 0.0, %v308
    %v310 = vpop.f32.mrb[0].mxu0
    %v311 = vadd.f32 0.0, %v310
    %312 = vmatprep.mubr.f32.mxu0 0.0
    %313 = vmatmul.mubr.f32.gmra.mrb[0].mxu0 %v139
    %v314 = vpop.f32.mrb[0].mxu0
    %v315 = vadd.f32 0.0, %v314
    %v316 = vpop.f32.mrb[0].mxu0
    %v317 = vadd.f32 0.0, %v316
    %318 = vmatprep.mubr.f32.mxu0 0.0
    %319 = vmatmul.mubr.f32.gmra.mrb[0].mxu0 %v142
    %v320 = vpop.f32.mrb[0].mxu0
    %v321 = vadd.f32 0.0, %v320
    %v322 = vpop.f32.mrb[0].mxu0
    %v323 = vadd.f32 0.0, %v322
    %324 = vmatprep.mubr.f32.mxu0 0.0
    %325 = vmatmul.mubr.f32.gmra.mrb[0].mxu0 %v145
    %v326 = vpop.f32.mrb[0].mxu0
    %v327 = vadd.f32 0.0, %v326
    %v328 = vpop.f32.mrb[0].mxu0
    %v329 = vadd.f32 0.0, %v328
    %330 = vmatprep.mubr.f32.mxu0 0.0
    %331 = vmatmul.mubr.f32.gmra.mrb[0].mxu0 %v148
    %v332 = vpop.f32.mrb[0].mxu0
    %v333 = vadd.f32 0.0, %v332
    %v334 = vpop.f32.mrb[0].mxu0
    %v335 = vadd.f32 0.0, %v334
    %336 = vmatprep.mubr.f32.mxu0 0.0
    %337 = vmatmul.mubr.f32.gmra.mrb[0].mxu0 %v151
    %v338 = vpop.f32.mrb[0].mxu0
    %v339 = vadd.f32 0.0, %v338
    %v340 = vpop.f32.mrb[0].mxu0
    %v341 = vadd.f32 0.0, %v340
    %342 = vmatprep.mubr.f32.mxu0 0.0
    %343 = vmatmul.mubr.f32.gmra.mrb[0].mxu0 %v154
    %v344 = vpop.f32.mrb[0].mxu0
    %v345 = vadd.f32 0.0, %v344
    %v346 = vpop.f32.mrb[0].mxu0
    %v347 = vadd.f32 0.0, %v346
    %348 = vmatprep.mubr.f32.mxu0 0.0
    %349 = vmatmul.mubr.f32.gmra.mrb[0].mxu0 %v157
    %v350 = vpop.f32.mrb[0].mxu0
    %v351 = vadd.f32 0.0, %v350
    %v352 = vpop.f32.mrb[0].mxu0
    %v353 = vadd.f32 0.0, %v352
    %354 = vmatprep.mubr.f32.mxu0 0.0
    %355 = vmatmul.mubr.f32.gmra.mrb[0].mxu0 %v160
    %v356 = vpop.f32.mrb[0].mxu0
    %v357 = vadd.f32 0.0, %v356
    %v358 = vpop.f32.mrb[0].mxu0
    %v359 = vadd.f32 0.0, %v358
    %360 = vmatprep.mubr.f32.mxu0 0.0
    %361 = vmatmul.mubr.f32.gmra.mrb[0].mxu0 %v163
    %v362 = vpop.f32.mrb[0].mxu0
    %v363 = vadd.f32 0.0, %v362
    %v364 = vpop.f32.mrb[0].mxu0
    %v365 = vadd.f32 0.0, %v364
    %366 = vmatprep.mubr.f32.mxu0 0.0
    %367 = vmatmul.mubr.f32.gmra.mrb[0].mxu0 %v166
    %v368 = vpop.f32.mrb[0].mxu0
    %v369 = vadd.f32 0.0, %v368
    %v370 = vpop.f32.mrb[0].mxu0
    %v371 = vadd.f32 0.0, %v370
    %372 = vmatprep.mubr.f32.mxu0 0.0
    %373 = vmatmul.mubr.f32.gmra.mrb[0].mxu0 %v169
    %v374 = vpop.f32.mrb[0].mxu0
    %v375 = vadd.f32 0.0, %v374
    %v376 = vpop.f32.mrb[0].mxu0
    %v377 = vadd.f32 0.0, %v376
    %378 = vmatprep.mubr.f32.mxu0 0.0
    %379 = vmatmul.mubr.f32.gmra.mrb[0].mxu0 %v172
    %v380 = vpop.f32.mrb[0].mxu0
    %v381 = vadd.f32 0.0, %v380
    %v382 = vpop.f32.mrb[0].mxu0
    %v383 = vadd.f32 0.0, %v382
    %384 = vmatprep.mubr.f32.mxu0 0.0
    %385 = vmatmul.mubr.f32.gmra.mrb[0].mxu0 %v175
    %v386 = vpop.f32.mrb[0].mxu0
    %v387 = vadd.f32 0.0, %v386
    %v388 = vpop.f32.mrb[0].mxu0
    %v389 = vadd.f32 0.0, %v388
    %390 = vmatprep.mubr.f32.mxu0 0.0
    %391 = vmatmul.mubr.f32.gmra.mrb[0].mxu0 %v178
    %v392 = vpop.f32.mrb[0].mxu0
    %v393 = vadd.f32 0.0, %v392
    %v394 = vpop.f32.mrb[0].mxu0
    %v395 = vadd.f32 0.0, %v394
    %396 = vmatprep.mubr.f32.mxu0 0.0
    %397 = vmatmul.mubr.f32.gmra.mrb[0].mxu0 %v181
    %v398 = vpop.f32.mrb[0].mxu0
    %v399 = vadd.f32 0.0, %v398
    %v400 = vpop.f32.mrb[0].mxu0
    %v401 = vadd.f32 0.0, %v400
    %402 = vdwg.mxu0
    %vm403 = vcmask 64512
    %v405 = vsel %vm403, %v52, 0
    %v408 = vsel %vm403, %v53, 0
    %v411 = vsel %vm403, %v54, 0
    %v414 = vsel %vm403, %v55, 0
    %v417 = vsel %vm403, %v56, 0
    %v420 = vsel %vm403, %v57, 0
    %v423 = vsel %vm403, %v58, 0
    %v426 = vsel %vm403, %v59, 0
    %v429 = vsel %vm403, %v60, 0
    %v432 = vsel %vm403, %v61, 0
    %v435 = vsel %vm403, %v62, 0
    %v438 = vsel %vm403, %v63, 0
    %v441 = vsel %vm403, %v64, 0
    %v444 = vsel %vm403, %v65, 0
    %v447 = vsel %vm403, %v66, 0
    %v450 = vsel %vm403, %v67, 0
    %v453 = vsel %vm403, %v68, 0
    %v456 = vsel %vm403, %v69, 0
    %v459 = vsel %vm403, %v70, 0
    %v462 = vsel %vm403, %v71, 0
    %v465 = vsel %vm403, %v72, 0
    %v468 = vsel %vm403, %v73, 0
    %v471 = vsel %vm403, %v74, 0
    %v474 = vsel %vm403, %v75, 0
    %v477 = vsel %vm403, %v76, 0
    %479 = vmatprep.subr.mxu0 %v78
    %480 = vmatpush1.msra.mxu0 %v77
    %481 = vmatprep.subr.mxu0 0.0
    %482 = vmatpush1.msra.mxu0 0.0
    %483 = vmatprep.subr.mxu0 0.0
    %484 = vmatpush1.msra.mxu0 0.0
    %485 = vmatprep.subr.mxu0 0.0
    %486 = vmatpush1.msra.mxu0 0.0
    %487 = vmatprep.subr.mxu0 0.0
    %488 = vmatpush1.msra.mxu0 0.0
    %489 = vmatprep.subr.mxu0 0.0
    %490 = vmatpush1.msra.mxu0 0.0
    %491 = vmatprep.subr.mxu0 0.0
    %492 = vmatpush1.msra.mxu0 0.0
    %493 = vmatprep.subr.mxu0 0.0
    %494 = vmatpush1.msra.mxu0 0.0
    %495 = vmatprep.subr.mxu0 0.0
    %496 = vmatpush1.msra.mxu0 0.0
    %497 = vmatprep.subr.mxu0 0.0
    %498 = vmatpush1.msra.mxu0 0.0
    %499 = vmatprep.subr.mxu0 0.0
    %500 = vmatpush1.msra.mxu0 0.0
    %501 = vmatprep.subr.mxu0 0.0
    %502 = vmatpush1.msra.mxu0 0.0
    %503 = vmatprep.subr.mxu0 0.0
    %504 = vmatpush1.msra.mxu0 0.0
    %505 = vmatprep.subr.mxu0 0.0
    %506 = vmatpush1.msra.mxu0 0.0
    %507 = vmatprep.subr.mxu0 0.0
    %508 = vmatpush1.msra.mxu0 0.0
    %509 = vmatprep.subr.mxu0 0.0
    %510 = vmatpush1.msra.mxu0 0.0
    %511 = vmatprep.subr.mxu0 0.0
    %512 = vmatpush1.msra.mxu0 0.0
    %513 = vmatprep.subr.mxu0 0.0
    %514 = vmatpush1.msra.mxu0 0.0
    %515 = vmatprep.subr.mxu0 0.0
    %516 = vmatpush1.msra.mxu0 0.0
    %517 = vmatprep.subr.mxu0 0.0
    %518 = vmatpush1.msra.mxu0 0.0
    %519 = vmatprep.subr.mxu0 0.0
    %520 = vmatpush1.msra.mxu0 0.0
    %521 = vmatprep.subr.mxu0 0.0
    %522 = vmatpush1.msra.mxu0 0.0
    %523 = vmatprep.subr.mxu0 0.0
    %524 = vmatpush1.msra.mxu0 0.0
    %525 = vmatprep.subr.mxu0 0.0
    %526 = vmatpush1.msra.mxu0 0.0
    %527 = vmatprep.subr.mxu0 0.0
    %528 = vmatpush1.msra.mxu0 0.0
    %529 = vmatprep.subr.mxu0 0.0
    %530 = vmatpush1.msra.mxu0 0.0
    %531 = vmatprep.subr.mxu0 0.0
    %532 = vmatpush1.msra.mxu0 0.0
    %533 = vmatprep.subr.mxu0 0.0
    %534 = vmatpush1.msra.mxu0 0.0
    %535 = vmatprep.subr.mxu0 0.0
    %536 = vmatpush1.msra.mxu0 0.0
    %537 = vmatprep.subr.mxu0 0.0
    %538 = vmatpush1.msra.mxu0 0.0
    %539 = vmatprep.subr.mxu0 0.0
    %540 = vmatpush1.msra.mxu0 0.0
    %541 = vmatprep.subr.mxu0 0.0
    %542 = vmatpush1.msra.mxu0 0.0
    %543 = vmatprep.mubr.f32.mxu0 0.0
    %544 = vmatmul.mubr.f32.gmra.mrb[0].mxu0 %v405
    %v545 = vpop.f32.mrb[0].mxu0
    %v546 = vadd.f32 %v255, %v545
    %v547 = vpop.f32.mrb[0].mxu0
    %v548 = vadd.f32 %v257, %v547
    %549 = vmatprep.mubr.f32.mxu0 0.0
    %550 = vmatmul.mubr.f32.gmra.mrb[0].mxu0 %v408
    %v551 = vpop.f32.mrb[0].mxu0
    %v552 = vadd.f32 %v261, %v551
    %v553 = vpop.f32.mrb[0].mxu0
    %v554 = vadd.f32 %v263, %v553
    %555 = vmatprep.mubr.f32.mxu0 0.0
    %556 = vmatmul.mubr.f32.gmra.mrb[0].mxu0 %v411
    %v557 = vpop.f32.mrb[0].mxu0
    %v558 = vadd.f32 %v267, %v557
    %v559 = vpop.f32.mrb[0].mxu0
    %v560 = vadd.f32 %v269, %v559
    %561 = vmatprep.mubr.f32.mxu0 0.0
    %562 = vmatmul.mubr.f32.gmra.mrb[0].mxu0 %v414
    %v563 = vpop.f32.mrb[0].mxu0
    %v564 = vadd.f32 %v273, %v563
    %v565 = vpop.f32.mrb[0].mxu0
    %v566 = vadd.f32 %v275, %v565
    %567 = vmatprep.mubr.f32.mxu0 0.0
    %568 = vmatmul.mubr.f32.gmra.mrb[0].mxu0 %v417
    %v569 = vpop.f32.mrb[0].mxu0
    %v570 = vadd.f32 %v279, %v569
    %v571 = vpop.f32.mrb[0].mxu0
    %v572 = vadd.f32 %v281, %v571
    %573 = vmatprep.mubr.f32.mxu0 0.0
    %574 = vmatmul.mubr.f32.gmra.mrb[0].mxu0 %v420
    %v575 = vpop.f32.mrb[0].mxu0
    %v576 = vadd.f32 %v285, %v575
    %v577 = vpop.f32.mrb[0].mxu0
    %v578 = vadd.f32 %v287, %v577
    %579 = vmatprep.mubr.f32.mxu0 0.0
    %580 = vmatmul.mubr.f32.gmra.mrb[0].mxu0 %v423
    %v581 = vpop.f32.mrb[0].mxu0
    %v582 = vadd.f32 %v291, %v581
    %v583 = vpop.f32.mrb[0].mxu0
    %v584 = vadd.f32 %v293, %v583
    %585 = vmatprep.mubr.f32.mxu0 0.0
    %586 = vmatmul.mubr.f32.gmra.mrb[0].mxu0 %v426
    %v587 = vpop.f32.mrb[0].mxu0
    %v588 = vadd.f32 %v297, %v587
    %v589 = vpop.f32.mrb[0].mxu0
    %v590 = vadd.f32 %v299, %v589
    %591 = vmatprep.mubr.f32.mxu0 0.0
    %592 = vmatmul.mubr.f32.gmra.mrb[0].mxu0 %v429
    %v593 = vpop.f32.mrb[0].mxu0
    %v594 = vadd.f32 %v303, %v593
    %v595 = vpop.f32.mrb[0].mxu0
    %v596 = vadd.f32 %v305, %v595
    %597 = vmatprep.mubr.f32.mxu0 0.0
    %598 = vmatmul.mubr.f32.gmra.mrb[0].mxu0 %v432
    %v599 = vpop.f32.mrb[0].mxu0
    %v600 = vadd.f32 %v309, %v599
    %v601 = vpop.f32.mrb[0].mxu0
    %v602 = vadd.f32 %v311, %v601
    %603 = vmatprep.mubr.f32.mxu0 0.0
    %604 = vmatmul.mubr.f32.gmra.mrb[0].mxu0 %v435
    %v605 = vpop.f32.mrb[0].mxu0
    %v606 = vadd.f32 %v315, %v605
    %v607 = vpop.f32.mrb[0].mxu0
    %v608 = vadd.f32 %v317, %v607
    %609 = vmatprep.mubr.f32.mxu0 0.0
    %610 = vmatmul.mubr.f32.gmra.mrb[0].mxu0 %v438
    %v611 = vpop.f32.mrb[0].mxu0
    %v612 = vadd.f32 %v321, %v611
    %v613 = vpop.f32.mrb[0].mxu0
    %v614 = vadd.f32 %v323, %v613
    %615 = vmatprep.mubr.f32.mxu0 0.0
    %616 = vmatmul.mubr.f32.gmra.mrb[0].mxu0 %v441
    %v617 = vpop.f32.mrb[0].mxu0
    %v618 = vadd.f32 %v327, %v617
    %v619 = vpop.f32.mrb[0].mxu0
    %v620 = vadd.f32 %v329, %v619
    %621 = vmatprep.mubr.f32.mxu0 0.0
    %622 = vmatmul.mubr.f32.gmra.mrb[0].mxu0 %v444
    %v623 = vpop.f32.mrb[0].mxu0
    %v624 = vadd.f32 %v333, %v623
    %v625 = vpop.f32.mrb[0].mxu0
    %v626 = vadd.f32 %v335, %v625
    %627 = vmatprep.mubr.f32.mxu0 0.0
    %628 = vmatmul.mubr.f32.gmra.mrb[0].mxu0 %v447
    %v629 = vpop.f32.mrb[0].mxu0
    %v630 = vadd.f32 %v339, %v629
    %v631 = vpop.f32.mrb[0].mxu0
    %v632 = vadd.f32 %v341, %v631
    %633 = vmatprep.mubr.f32.mxu0 0.0
    %634 = vmatmul.mubr.f32.gmra.mrb[0].mxu0 %v450
    %v635 = vpop.f32.mrb[0].mxu0
    %v636 = vadd.f32 %v345, %v635
    %v637 = vpop.f32.mrb[0].mxu0
    %v638 = vadd.f32 %v347, %v637
    %639 = vmatprep.mubr.f32.mxu0 0.0
    %640 = vmatmul.mubr.f32.gmra.mrb[0].mxu0 %v453
    %v641 = vpop.f32.mrb[0].mxu0
    %v642 = vadd.f32 %v351, %v641
    %v643 = vpop.f32.mrb[0].mxu0
    %v644 = vadd.f32 %v353, %v643
    %645 = vmatprep.mubr.f32.mxu0 0.0
    %646 = vmatmul.mubr.f32.gmra.mrb[0].mxu0 %v456
    %v647 = vpop.f32.mrb[0].mxu0
    %v648 = vadd.f32 %v357, %v647
    %v649 = vpop.f32.mrb[0].mxu0
    %v650 = vadd.f32 %v359, %v649
    %651 = vmatprep.mubr.f32.mxu0 0.0
    %652 = vmatmul.mubr.f32.gmra.mrb[0].mxu0 %v459
    %v653 = vpop.f32.mrb[0].mxu0
    %v654 = vadd.f32 %v363, %v653
    %v655 = vpop.f32.mrb[0].mxu0
    %v656 = vadd.f32 %v365, %v655
    %657 = vmatprep.mubr.f32.mxu0 0.0
    %658 = vmatmul.mubr.f32.gmra.mrb[0].mxu0 %v462
    %v659 = vpop.f32.mrb[0].mxu0
    %v660 = vadd.f32 %v369, %v659
    %v661 = vpop.f32.mrb[0].mxu0
    %v662 = vadd.f32 %v371, %v661
    %663 = vmatprep.mubr.f32.mxu0 0.0
    %664 = vmatmul.mubr.f32.gmra.mrb[0].mxu0 %v465
    %v665 = vpop.f32.mrb[0].mxu0
    %v666 = vadd.f32 %v375, %v665
    %v667 = vpop.f32.mrb[0].mxu0
    %v668 = vadd.f32 %v377, %v667
    %669 = vmatprep.mubr.f32.mxu0 0.0
    %670 = vmatmul.mubr.f32.gmra.mrb[0].mxu0 %v468
    %v671 = vpop.f32.mrb[0].mxu0
    %v672 = vadd.f32 %v381, %v671
    %v673 = vpop.f32.mrb[0].mxu0
    %v674 = vadd.f32 %v383, %v673
    %675 = vmatprep.mubr.f32.mxu0 0.0
    %676 = vmatmul.mubr.f32.gmra.mrb[0].mxu0 %v471
    %v677 = vpop.f32.mrb[0].mxu0
    %v678 = vadd.f32 %v387, %v677
    %v679 = vpop.f32.mrb[0].mxu0
    %v680 = vadd.f32 %v389, %v679
    %681 = vmatprep.mubr.f32.mxu0 0.0
    %682 = vmatmul.mubr.f32.gmra.mrb[0].mxu0 %v474
    %v683 = vpop.f32.mrb[0].mxu0
    %v684 = vadd.f32 %v393, %v683
    %v685 = vpop.f32.mrb[0].mxu0
    %v686 = vadd.f32 %v395, %v685
    %687 = vmatprep.mubr.f32.mxu0 0.0
    %688 = vmatmul.mubr.f32.gmra.mrb[0].mxu0 %v477
    %v689 = vpop.f32.mrb[0].mxu0
    %v690 = vadd.f32 %v399, %v689
    %v691 = vpop.f32.mrb[0].mxu0
    %v692 = vadd.f32 %v401, %v691
    %693 = vdwg.mxu0
    %v694 = vld [vmem:[%s4] sm:$0x3]
    %v696 = vlaneseq
    %v697 = vshrl.u32 %v696, 7
    %v698 = vsub.s32 0, %v697
    %v699 = vrot.slane %v694, %v698
    %v700 = vlaneseq
    %v701 = vshrl.u32 %v700, 7
    %v702 = vsub.s32 1, %v701
    %v703 = vrot.slane %v694, %v702
    %v706 = vadd.f32 %v546, %v699
    %v707 = vadd.f32 %v548, %v703
    %v708 = vadd.f32 %v552, %v699
    %v709 = vadd.f32 %v554, %v703
    %v710 = vadd.f32 %v558, %v699
    %v711 = vadd.f32 %v560, %v703
    %v712 = vadd.f32 %v564, %v699
    %v713 = vadd.f32 %v566, %v703
    %v714 = vadd.f32 %v570, %v699
    %v715 = vadd.f32 %v572, %v703
    %v716 = vadd.f32 %v576, %v699
    %v717 = vadd.f32 %v578, %v703
    %v718 = vadd.f32 %v582, %v699
    %v719 = vadd.f32 %v584, %v703
    %v720 = vadd.f32 %v588, %v699
    %v721 = vadd.f32 %v590, %v703
    %v722 = vadd.f32 %v594, %v699
    %v723 = vadd.f32 %v596, %v703
    %v724 = vadd.f32 %v600, %v699
    %v725 = vadd.f32 %v602, %v703
    %v726 = vadd.f32 %v606, %v699
    %v727 = vadd.f32 %v608, %v703
    %v728 = vadd.f32 %v612, %v699
    %v729 = vadd.f32 %v614, %v703
    %v730 = vadd.f32 %v618, %v699
    %v731 = vadd.f32 %v620, %v703
    %v732 = vadd.f32 %v624, %v699
    %v733 = vadd.f32 %v626, %v703
    %v734 = vadd.f32 %v630, %v699
    %v735 = vadd.f32 %v632, %v703
    %v736 = vadd.f32 %v636, %v699
    %v737 = vadd.f32 %v638, %v703
    %v738 = vadd.f32 %v642, %v699
    %v739 = vadd.f32 %v644, %v703
    %v740 = vadd.f32 %v648, %v699
    %v741 = vadd.f32 %v650, %v703
    %v742 = vadd.f32 %v654, %v699
    %v743 = vadd.f32 %v656, %v703
    %v744 = vadd.f32 %v660, %v699
    %v745 = vadd.f32 %v662, %v703
    %v746 = vadd.f32 %v666, %v699
    %v747 = vadd.f32 %v668, %v703
    %v748 = vadd.f32 %v672, %v699
    %v749 = vadd.f32 %v674, %v703
    %v750 = vadd.f32 %v678, %v699
    %v751 = vadd.f32 %v680, %v703
    %v752 = vadd.f32 %v684, %v699
    %v753 = vadd.f32 %v686, %v703
    %v754 = vadd.f32 %v690, %v699
    %v755 = vadd.f32 %v692, %v703
    %v756 = vmax.f32 %v706, 0.0
    %v757 = vmax.f32 %v707, 0.0
    %v758 = vmax.f32 %v708, 0.0
    %v759 = vmax.f32 %v709, 0.0
    %v760 = vmax.f32 %v710, 0.0
    %v761 = vmax.f32 %v711, 0.0
    %v762 = vmax.f32 %v712, 0.0
    %v763 = vmax.f32 %v713, 0.0
    %v764 = vmax.f32 %v714, 0.0
    %v765 = vmax.f32 %v715, 0.0
    %v766 = vmax.f32 %v716, 0.0
    %v767 = vmax.f32 %v717, 0.0
    %v768 = vmax.f32 %v718, 0.0
    %v769 = vmax.f32 %v719, 0.0
    %v770 = vmax.f32 %v720, 0.0
    %v771 = vmax.f32 %v721, 0.0
    %v772 = vmax.f32 %v722, 0.0
    %v773 = vmax.f32 %v723, 0.0
    %v774 = vmax.f32 %v724, 0.0
    %v775 = vmax.f32 %v725, 0.0
    %v776 = vmax.f32 %v726, 0.0
    %v777 = vmax.f32 %v727, 0.0
    %v778 = vmax.f32 %v728, 0.0
    %v779 = vmax.f32 %v729, 0.0
    %v780 = vmax.f32 %v730, 0.0
    %v781 = vmax.f32 %v731, 0.0
    %v782 = vmax.f32 %v732, 0.0
    %v783 = vmax.f32 %v733, 0.0
    %v784 = vmax.f32 %v734, 0.0
    %v785 = vmax.f32 %v735, 0.0
    %v786 = vmax.f32 %v736, 0.0
    %v787 = vmax.f32 %v737, 0.0
    %v788 = vmax.f32 %v738, 0.0
    %v789 = vmax.f32 %v739, 0.0
    %v790 = vmax.f32 %v740, 0.0
    %v791 = vmax.f32 %v741, 0.0
    %v792 = vmax.f32 %v742, 0.0
    %v793 = vmax.f32 %v743, 0.0
    %v794 = vmax.f32 %v744, 0.0
    %v795 = vmax.f32 %v745, 0.0
    %v796 = vmax.f32 %v746, 0.0
    %v797 = vmax.f32 %v747, 0.0
    %v798 = vmax.f32 %v748, 0.0
    %v799 = vmax.f32 %v749, 0.0
    %v800 = vmax.f32 %v750, 0.0
    %v801 = vmax.f32 %v751, 0.0
    %v802 = vmax.f32 %v752, 0.0
    %v803 = vmax.f32 %v753, 0.0
    %v804 = vmax.f32 %v754, 0.0
    %v805 = vmax.f32 %v755, 0.0
    %v806 = vld [vmem:[%s5] sm:$0xff]
    %v807 = vld [vmem:[%s5 + $0x8] sm:$0xff]
    %v808 = vld [vmem:[%s5 + $0x10] sm:$0xff]
    %v809 = vld [vmem:[%s5 + $0x18] sm:$0xff]
    %v810 = vld [vmem:[%s5 + $0x20] sm:$0xff]
    %v811 = vld [vmem:[%s5 + $0x28] sm:$0xff]
    %v812 = vld [vmem:[%s5 + $0x30] sm:$0xff]
    %v813 = vld [vmem:[%s5 + $0x38] sm:$0xff]
    %v814 = vld [vmem:[%s5 + $0x40] sm:$0xff]
    %v815 = vld [vmem:[%s5 + $0x48] sm:$0xff]
    %v816 = vld [vmem:[%s5 + $0x50] sm:$0xff]
    %v817 = vld [vmem:[%s5 + $0x58] sm:$0xff]
    %v818 = vld [vmem:[%s5 + $0x60] sm:$0xff]
    %v819 = vld [vmem:[%s5 + $0x68] sm:$0xff]
    %v820 = vld [vmem:[%s5 + $0x70] sm:$0xff]
    %v821 = vld [vmem:[%s5 + $0x78] sm:$0xff]
    %v822 = vld [vmem:[%s5 + $0x80] sm:$0xff]
    %v823 = vld [vmem:[%s5 + $0x88] sm:$0xff]
    %v824 = vld [vmem:[%s5 + $0x90] sm:$0xff]
    %v825 = vld [vmem:[%s5 + $0x98] sm:$0xff]
    %v826 = vld [vmem:[%s5 + $0xa0] sm:$0xff]
    %v827 = vld [vmem:[%s5 + $0xa8] sm:$0xff]
    %v828 = vld [vmem:[%s5 + $0xb0] sm:$0xff]
    %v829 = vld [vmem:[%s5 + $0xb8] sm:$0xff]
    %v830 = vld [vmem:[%s5 + $0xc0] sm:$0xff]
    %v831 = vld [vmem:[%s5 + $0xc8] sm:$0xff]
    %v832 = vld [vmem:[%s5 + $0xd0] sm:$0xff]
    %v833 = vld [vmem:[%s5 + $0xd8] sm:$0xff]
    %v834 = vld [vmem:[%s5 + $0xe0] sm:$0xff]
    %v835 = vld [vmem:[%s5 + $0xe8] sm:$0xff]
    %v836 = vld [vmem:[%s5 + $0xf0] sm:$0xff]
    %v837 = vld [vmem:[%s5 + $0xf8] sm:$0xff]
    %v838 = vld [vmem:[%s5 + $0x100] sm:$0xff]
    %v839 = vld [vmem:[%s5 + $0x108] sm:$0xff]
    %v840 = vld [vmem:[%s5 + $0x110] sm:$0xff]
    %v841 = vld [vmem:[%s5 + $0x118] sm:$0xff]
    %v842 = vld [vmem:[%s5 + $0x120] sm:$0xff]
    %v843 = vld [vmem:[%s5 + $0x128] sm:$0xff]
    %v844 = vld [vmem:[%s5 + $0x130] sm:$0xff]
    %v845 = vld [vmem:[%s5 + $0x138] sm:$0xff]
    %v846 = vld [vmem:[%s5 + $0x140] sm:$0xff]
    %v847 = vld [vmem:[%s5 + $0x148] sm:$0xff]
    %v848 = vld [vmem:[%s5 + $0x150] sm:$0xff]
    %v849 = vld [vmem:[%s5 + $0x158] sm:$0xff]
    %v850 = vld [vmem:[%s5 + $0x160] sm:$0xff]
    %v851 = vld [vmem:[%s5 + $0x168] sm:$0xff]
    %v852 = vld [vmem:[%s5 + $0x170] sm:$0xff]
    %v853 = vld [vmem:[%s5 + $0x178] sm:$0xff]
    %v854 = vld [vmem:[%s5 + $0x180] sm:$0xff]
    %v855 = vld [vmem:[%s5 + $0x188] sm:$0xff]
    %v856 = vld [vmem:[%s5 + $0x190] sm:$0xff]
    %v857 = vld [vmem:[%s5 + $0x198] sm:$0xff]
    %v858 = vld [vmem:[%s5 + $0x1a0] sm:$0xff]
    %v859 = vld [vmem:[%s5 + $0x1a8] sm:$0xff]
    %v860 = vld [vmem:[%s5 + $0x1b0] sm:$0xff]
    %v861 = vld [vmem:[%s5 + $0x1b8] sm:$0xff]
    %v862 = vld [vmem:[%s5 + $0x1c0] sm:$0xff]
    %v863 = vld [vmem:[%s5 + $0x1c8] sm:$0xff]
    %v864 = vld [vmem:[%s5 + $0x1d0] sm:$0xff]
    %v865 = vld [vmem:[%s5 + $0x1d8] sm:$0xff]
    %v866 = vld [vmem:[%s5 + $0x1e0] sm:$0xff]
    %v867 = vld [vmem:[%s5 + $0x1e8] sm:$0xff]
    %v868 = vld [vmem:[%s5 + $0x1f0] sm:$0xff]
    %v869 = vld [vmem:[%s5 + $0x1f8] sm:$0xff]
    %v870 = vld [vmem:[%s6] sm:$0x3]
    %v872 = vlaneseq
    %v873 = vshrl.u32 %v872, 7
    %v874 = vsub.s32 0, %v873
    %v875 = vrot.slane %v870, %v874
    %v876 = vlaneseq
    %v877 = vshrl.u32 %v876, 7
    %v878 = vsub.s32 1, %v877
    %v879 = vrot.slane %v870, %v878
    %882 = vmatprep.subr.mxu0 %v807
    %883 = vmatpush1.msra.mxu0 %v806
    %884 = vmatprep.subr.mxu0 %v809
    %885 = vmatpush1.msra.mxu0 %v808
    %886 = vmatprep.subr.mxu0 %v811
    %887 = vmatpush1.msra.mxu0 %v810
    %888 = vmatprep.subr.mxu0 %v813
    %889 = vmatpush1.msra.mxu0 %v812
    %890 = vmatprep.subr.mxu0 %v815
    %891 = vmatpush1.msra.mxu0 %v814
    %892 = vmatprep.subr.mxu0 %v817
    %893 = vmatpush1.msra.mxu0 %v816
    %894 = vmatprep.subr.mxu0 %v819
    %895 = vmatpush1.msra.mxu0 %v818
    %896 = vmatprep.subr.mxu0 %v821
    %897 = vmatpush1.msra.mxu0 %v820
    %898 = vmatprep.subr.mxu0 %v823
    %899 = vmatpush1.msra.mxu0 %v822
    %900 = vmatprep.subr.mxu0 %v825
    %901 = vmatpush1.msra.mxu0 %v824
    %902 = vmatprep.subr.mxu0 %v827
    %903 = vmatpush1.msra.mxu0 %v826
    %904 = vmatprep.subr.mxu0 %v829
    %905 = vmatpush1.msra.mxu0 %v828
    %906 = vmatprep.subr.mxu0 %v831
    %907 = vmatpush1.msra.mxu0 %v830
    %908 = vmatprep.subr.mxu0 %v833
    %909 = vmatpush1.msra.mxu0 %v832
    %910 = vmatprep.subr.mxu0 %v835
    %911 = vmatpush1.msra.mxu0 %v834
    %912 = vmatprep.subr.mxu0 %v837
    %913 = vmatpush1.msra.mxu0 %v836
    %914 = vmatprep.subr.mxu0 %v839
    %915 = vmatpush1.msra.mxu0 %v838
    %916 = vmatprep.subr.mxu0 %v841
    %917 = vmatpush1.msra.mxu0 %v840
    %918 = vmatprep.subr.mxu0 %v843
    %919 = vmatpush1.msra.mxu0 %v842
    %920 = vmatprep.subr.mxu0 %v845
    %921 = vmatpush1.msra.mxu0 %v844
    %922 = vmatprep.subr.mxu0 %v847
    %923 = vmatpush1.msra.mxu0 %v846
    %924 = vmatprep.subr.mxu0 %v849
    %925 = vmatpush1.msra.mxu0 %v848
    %926 = vmatprep.subr.mxu0 %v851
    %927 = vmatpush1.msra.mxu0 %v850
    %928 = vmatprep.subr.mxu0 %v853
    %929 = vmatpush1.msra.mxu0 %v852
    %930 = vmatprep.subr.mxu0 %v855
    %931 = vmatpush1.msra.mxu0 %v854
    %932 = vmatprep.subr.mxu0 %v857
    %933 = vmatpush1.msra.mxu0 %v856
    %934 = vmatprep.subr.mxu0 %v859
    %935 = vmatpush1.msra.mxu0 %v858
    %936 = vmatprep.subr.mxu0 %v861
    %937 = vmatpush1.msra.mxu0 %v860
    %938 = vmatprep.subr.mxu0 %v863
    %939 = vmatpush1.msra.mxu0 %v862
    %940 = vmatprep.subr.mxu0 %v865
    %941 = vmatpush1.msra.mxu0 %v864
    %942 = vmatprep.subr.mxu0 %v867
    %943 = vmatpush1.msra.mxu0 %v866
    %944 = vmatprep.subr.mxu0 %v869
    %945 = vmatpush1.msra.mxu0 %v868
    %946 = vmatprep.mubr.f32.mxu0 %v757
    %947 = vmatmul.mubr.f32.gmra.mrb[0].mxu0 %v756
    %v948 = vpop.f32.mrb[0].mxu0
    %v949 = vadd.f32 %v875, %v948
    %v950 = vpop.f32.mrb[0].mxu0
    %v951 = vadd.f32 %v879, %v950
    %952 = vmatprep.mubr.f32.mxu0 %v759
    %953 = vmatmul.mubr.f32.gmra.mrb[0].mxu0 %v758
    %v954 = vpop.f32.mrb[0].mxu0
    %v955 = vadd.f32 %v875, %v954
    %v956 = vpop.f32.mrb[0].mxu0
    %v957 = vadd.f32 %v879, %v956
    %958 = vmatprep.mubr.f32.mxu0 %v761
    %959 = vmatmul.mubr.f32.gmra.mrb[0].mxu0 %v760
    %v960 = vpop.f32.mrb[0].mxu0
    %v961 = vadd.f32 %v875, %v960
    %v962 = vpop.f32.mrb[0].mxu0
    %v963 = vadd.f32 %v879, %v962
    %964 = vmatprep.mubr.f32.mxu0 %v763
    %965 = vmatmul.mubr.f32.gmra.mrb[0].mxu0 %v762
    %v966 = vpop.f32.mrb[0].mxu0
    %v967 = vadd.f32 %v875, %v966
    %v968 = vpop.f32.mrb[0].mxu0
    %v969 = vadd.f32 %v879, %v968
    %970 = vmatprep.mubr.f32.mxu0 %v765
    %971 = vmatmul.mubr.f32.gmra.mrb[0].mxu0 %v764
    %v972 = vpop.f32.mrb[0].mxu0
    %v973 = vadd.f32 %v875, %v972
    %v974 = vpop.f32.mrb[0].mxu0
    %v975 = vadd.f32 %v879, %v974
    %976 = vmatprep.mubr.f32.mxu0 %v767
    %977 = vmatmul.mubr.f32.gmra.mrb[0].mxu0 %v766
    %v978 = vpop.f32.mrb[0].mxu0
    %v979 = vadd.f32 %v875, %v978
    %v980 = vpop.f32.mrb[0].mxu0
    %v981 = vadd.f32 %v879, %v980
    %982 = vmatprep.mubr.f32.mxu0 %v769
    %983 = vmatmul.mubr.f32.gmra.mrb[0].mxu0 %v768
    %v984 = vpop.f32.mrb[0].mxu0
    %v985 = vadd.f32 %v875, %v984
    %v986 = vpop.f32.mrb[0].mxu0
    %v987 = vadd.f32 %v879, %v986
    %988 = vmatprep.mubr.f32.mxu0 %v771
    %989 = vmatmul.mubr.f32.gmra.mrb[0].mxu0 %v770
    %v990 = vpop.f32.mrb[0].mxu0
    %v991 = vadd.f32 %v875, %v990
    %v992 = vpop.f32.mrb[0].mxu0
    %v993 = vadd.f32 %v879, %v992
    %994 = vmatprep.mubr.f32.mxu0 %v773
    %995 = vmatmul.mubr.f32.gmra.mrb[0].mxu0 %v772
    %v996 = vpop.f32.mrb[0].mxu0
    %v997 = vadd.f32 %v875, %v996
    %v998 = vpop.f32.mrb[0].mxu0
    %v999 = vadd.f32 %v879, %v998
    %1000 = vmatprep.mubr.f32.mxu0 %v775
    %1001 = vmatmul.mubr.f32.gmra.mrb[0].mxu0 %v774
    %v1002 = vpop.f32.mrb[0].mxu0
    %v1003 = vadd.f32 %v875, %v1002
    %v1004 = vpop.f32.mrb[0].mxu0
    %v1005 = vadd.f32 %v879, %v1004
    %1006 = vmatprep.mubr.f32.mxu0 %v777
    %1007 = vmatmul.mubr.f32.gmra.mrb[0].mxu0 %v776
    %v1008 = vpop.f32.mrb[0].mxu0
    %v1009 = vadd.f32 %v875, %v1008
    %v1010 = vpop.f32.mrb[0].mxu0
    %v1011 = vadd.f32 %v879, %v1010
    %1012 = vmatprep.mubr.f32.mxu0 %v779
    %1013 = vmatmul.mubr.f32.gmra.mrb[0].mxu0 %v778
    %v1014 = vpop.f32.mrb[0].mxu0
    %v1015 = vadd.f32 %v875, %v1014
    %v1016 = vpop.f32.mrb[0].mxu0
    %v1017 = vadd.f32 %v879, %v1016
    %1018 = vmatprep.mubr.f32.mxu0 %v781
    %1019 = vmatmul.mubr.f32.gmra.mrb[0].mxu0 %v780
    %v1020 = vpop.f32.mrb[0].mxu0
    %v1021 = vadd.f32 %v875, %v1020
    %v1022 = vpop.f32.mrb[0].mxu0
    %v1023 = vadd.f32 %v879, %v1022
    %1024 = vmatprep.mubr.f32.mxu0 %v783
    %1025 = vmatmul.mubr.f32.gmra.mrb[0].mxu0 %v782
    %v1026 = vpop.f32.mrb[0].mxu0
    %v1027 = vadd.f32 %v875, %v1026
    %v1028 = vpop.f32.mrb[0].mxu0
    %v1029 = vadd.f32 %v879, %v1028
    %1030 = vmatprep.mubr.f32.mxu0 %v785
    %1031 = vmatmul.mubr.f32.gmra.mrb[0].mxu0 %v784
    %v1032 = vpop.f32.mrb[0].mxu0
    %v1033 = vadd.f32 %v875, %v1032
    %v1034 = vpop.f32.mrb[0].mxu0
    %v1035 = vadd.f32 %v879, %v1034
    %1036 = vmatprep.mubr.f32.mxu0 %v787
    %1037 = vmatmul.mubr.f32.gmra.mrb[0].mxu0 %v786
    %v1038 = vpop.f32.mrb[0].mxu0
    %v1039 = vadd.f32 %v875, %v1038
    %v1040 = vpop.f32.mrb[0].mxu0
    %v1041 = vadd.f32 %v879, %v1040
    %1042 = vmatprep.mubr.f32.mxu0 %v789
    %1043 = vmatmul.mubr.f32.gmra.mrb[0].mxu0 %v788
    %v1044 = vpop.f32.mrb[0].mxu0
    %v1045 = vadd.f32 %v875, %v1044
    %v1046 = vpop.f32.mrb[0].mxu0
    %v1047 = vadd.f32 %v879, %v1046
    %1048 = vmatprep.mubr.f32.mxu0 %v791
    %1049 = vmatmul.mubr.f32.gmra.mrb[0].mxu0 %v790
    %v1050 = vpop.f32.mrb[0].mxu0
    %v1051 = vadd.f32 %v875, %v1050
    %v1052 = vpop.f32.mrb[0].mxu0
    %v1053 = vadd.f32 %v879, %v1052
    %1054 = vmatprep.mubr.f32.mxu0 %v793
    %1055 = vmatmul.mubr.f32.gmra.mrb[0].mxu0 %v792
    %v1056 = vpop.f32.mrb[0].mxu0
    %v1057 = vadd.f32 %v875, %v1056
    %v1058 = vpop.f32.mrb[0].mxu0
    %v1059 = vadd.f32 %v879, %v1058
    %1060 = vmatprep.mubr.f32.mxu0 %v795
    %1061 = vmatmul.mubr.f32.gmra.mrb[0].mxu0 %v794
    %v1062 = vpop.f32.mrb[0].mxu0
    %v1063 = vadd.f32 %v875, %v1062
    %v1064 = vpop.f32.mrb[0].mxu0
    %v1065 = vadd.f32 %v879, %v1064
    %1066 = vmatprep.mubr.f32.mxu0 %v797
    %1067 = vmatmul.mubr.f32.gmra.mrb[0].mxu0 %v796
    %v1068 = vpop.f32.mrb[0].mxu0
    %v1069 = vadd.f32 %v875, %v1068
    %v1070 = vpop.f32.mrb[0].mxu0
    %v1071 = vadd.f32 %v879, %v1070
    %1072 = vmatprep.mubr.f32.mxu0 %v799
    %1073 = vmatmul.mubr.f32.gmra.mrb[0].mxu0 %v798
    %v1074 = vpop.f32.mrb[0].mxu0
    %v1075 = vadd.f32 %v875, %v1074
    %v1076 = vpop.f32.mrb[0].mxu0
    %v1077 = vadd.f32 %v879, %v1076
    %1078 = vmatprep.mubr.f32.mxu0 %v801
    %1079 = vmatmul.mubr.f32.gmra.mrb[0].mxu0 %v800
    %v1080 = vpop.f32.mrb[0].mxu0
    %v1081 = vadd.f32 %v875, %v1080
    %v1082 = vpop.f32.mrb[0].mxu0
    %v1083 = vadd.f32 %v879, %v1082
    %1084 = vmatprep.mubr.f32.mxu0 %v803
    %1085 = vmatmul.mubr.f32.gmra.mrb[0].mxu0 %v802
    %v1086 = vpop.f32.mrb[0].mxu0
    %v1087 = vadd.f32 %v875, %v1086
    %v1088 = vpop.f32.mrb[0].mxu0
    %v1089 = vadd.f32 %v879, %v1088
    %1090 = vmatprep.mubr.f32.mxu0 %v805
    %1091 = vmatmul.mubr.f32.gmra.mrb[0].mxu0 %v804
    %v1092 = vpop.f32.mrb[0].mxu0
    %v1093 = vadd.f32 %v875, %v1092
    %v1094 = vpop.f32.mrb[0].mxu0
    %v1095 = vadd.f32 %v879, %v1094
    %1096 = vdwg.mxu0
    %v1097 = vmax.f32 %v949, 0.0
    %v1098 = vmax.f32 %v951, 0.0
    %v1099 = vmax.f32 %v955, 0.0
    %v1100 = vmax.f32 %v957, 0.0
    %v1101 = vmax.f32 %v961, 0.0
    %v1102 = vmax.f32 %v963, 0.0
    %v1103 = vmax.f32 %v967, 0.0
    %v1104 = vmax.f32 %v969, 0.0
    %v1105 = vmax.f32 %v973, 0.0
    %v1106 = vmax.f32 %v975, 0.0
    %v1107 = vmax.f32 %v979, 0.0
    %v1108 = vmax.f32 %v981, 0.0
    %v1109 = vmax.f32 %v985, 0.0
    %v1110 = vmax.f32 %v987, 0.0
    %v1111 = vmax.f32 %v991, 0.0
    %v1112 = vmax.f32 %v993, 0.0
    %v1113 = vmax.f32 %v997, 0.0
    %v1114 = vmax.f32 %v999, 0.0
    %v1115 = vmax.f32 %v1003, 0.0
    %v1116 = vmax.f32 %v1005, 0.0
    %v1117 = vmax.f32 %v1009, 0.0
    %v1118 = vmax.f32 %v1011, 0.0
    %v1119 = vmax.f32 %v1015, 0.0
    %v1120 = vmax.f32 %v1017, 0.0
    %v1121 = vmax.f32 %v1021, 0.0
    %v1122 = vmax.f32 %v1023, 0.0
    %v1123 = vmax.f32 %v1027, 0.0
    %v1124 = vmax.f32 %v1029, 0.0
    %v1125 = vmax.f32 %v1033, 0.0
    %v1126 = vmax.f32 %v1035, 0.0
    %v1127 = vmax.f32 %v1039, 0.0
    %v1128 = vmax.f32 %v1041, 0.0
    %v1129 = vmax.f32 %v1045, 0.0
    %v1130 = vmax.f32 %v1047, 0.0
    %v1131 = vmax.f32 %v1051, 0.0
    %v1132 = vmax.f32 %v1053, 0.0
    %v1133 = vmax.f32 %v1057, 0.0
    %v1134 = vmax.f32 %v1059, 0.0
    %v1135 = vmax.f32 %v1063, 0.0
    %v1136 = vmax.f32 %v1065, 0.0
    %v1137 = vmax.f32 %v1069, 0.0
    %v1138 = vmax.f32 %v1071, 0.0
    %v1139 = vmax.f32 %v1075, 0.0
    %v1140 = vmax.f32 %v1077, 0.0
    %v1141 = vmax.f32 %v1081, 0.0
    %v1142 = vmax.f32 %v1083, 0.0
    %v1143 = vmax.f32 %v1087, 0.0
    %v1144 = vmax.f32 %v1089, 0.0
    %v1145 = vmax.f32 %v1093, 0.0
    %v1146 = vmax.f32 %v1095, 0.0
    %v1147 = vld [vmem:[#allocation2] sm:$0xff]
    %v1148 = vld [vmem:[#allocation2 + $0x8] sm:$0xff]
    %v1149 = vld [vmem:[#allocation2 + $0x10] sm:$0xff]
    %v1150 = vld [vmem:[#allocation2 + $0x18] sm:$0xff]
    %v1151 = vld [vmem:[#allocation2 + $0x20] sm:$0xff]
    %v1152 = vld [vmem:[#allocation2 + $0x28] sm:$0xff]
    %v1153 = vld [vmem:[#allocation2 + $0x30] sm:$0xff]
    %v1154 = vld [vmem:[#allocation2 + $0x38] sm:$0xff]
    %v1155 = vld [vmem:[#allocation2 + $0x40] sm:$0xff]
    %v1156 = vld [vmem:[#allocation2 + $0x48] sm:$0xff]
    %v1157 = vld [vmem:[#allocation2 + $0x50] sm:$0xff]
    %v1158 = vld [vmem:[#allocation2 + $0x58] sm:$0xff]
    %v1159 = vld [vmem:[#allocation2 + $0x60] sm:$0xff]
    %v1160 = vld [vmem:[#allocation2 + $0x68] sm:$0xff]
    %v1161 = vld [vmem:[#allocation2 + $0x70] sm:$0xff]
    %v1162 = vld [vmem:[#allocation2 + $0x78] sm:$0xff]
    %v1163 = vld [vmem:[#allocation2 + $0x80] sm:$0xff]
    %v1164 = vld [vmem:[#allocation2 + $0x88] sm:$0xff]
    %v1165 = vld [vmem:[#allocation2 + $0x90] sm:$0xff]
    %v1166 = vld [vmem:[#allocation2 + $0x98] sm:$0xff]
    %v1167 = vld [vmem:[#allocation2 + $0xa0] sm:$0xff]
    %v1168 = vld [vmem:[#allocation2 + $0xa8] sm:$0xff]
    %v1169 = vld [vmem:[#allocation2 + $0xb0] sm:$0xff]
    %v1170 = vld [vmem:[#allocation2 + $0xb8] sm:$0xff]
    %v1171 = vld [vmem:[#allocation2 + $0xc0] sm:$0xff]
    %v1172 = vld [vmem:[#allocation2 + $0xc8] sm:$0xff]
    %v1173 = vld [vmem:[#allocation2 + $0xd0] sm:$0xff]
    %v1174 = vld [vmem:[#allocation2 + $0xd8] sm:$0xff]
    %v1175 = vld [vmem:[#allocation2 + $0xe0] sm:$0xff]
    %v1176 = vld [vmem:[#allocation2 + $0xe8] sm:$0xff]
    %v1177 = vld [vmem:[#allocation2 + $0xf0] sm:$0xff]
    %v1178 = vld [vmem:[#allocation2 + $0xf8] sm:$0xff]
    %v1179 = vld [vmem:[#allocation2 + $0x100] sm:$0xff]
    %v1180 = vld [vmem:[#allocation2 + $0x108] sm:$0xff]
    %v1181 = vld [vmem:[#allocation2 + $0x110] sm:$0xff]
    %v1182 = vld [vmem:[#allocation2 + $0x118] sm:$0xff]
    %v1183 = vld [vmem:[#allocation2 + $0x120] sm:$0xff]
    %v1184 = vld [vmem:[#allocation2 + $0x128] sm:$0xff]
    %v1185 = vld [vmem:[#allocation2 + $0x130] sm:$0xff]
    %v1186 = vld [vmem:[#allocation2 + $0x138] sm:$0xff]
    %v1187 = vld [vmem:[#allocation2 + $0x140] sm:$0xff]
    %v1188 = vld [vmem:[#allocation2 + $0x148] sm:$0xff]
    %v1189 = vld [vmem:[#allocation2 + $0x150] sm:$0xff]
    %v1190 = vld [vmem:[#allocation2 + $0x158] sm:$0xff]
    %v1191 = vld [vmem:[#allocation2 + $0x160] sm:$0xff]
    %v1192 = vld [vmem:[#allocation2 + $0x168] sm:$0xff]
    %v1193 = vld [vmem:[#allocation2 + $0x170] sm:$0xff]
    %v1194 = vld [vmem:[#allocation2 + $0x178] sm:$0xff]
    %v1195 = vld [vmem:[#allocation2 + $0x180] sm:$0xff]
    %v1196 = vld [vmem:[#allocation2 + $0x188] sm:$0xff]
    %v1197 = vld [vmem:[#allocation2 + $0x190] sm:$0xff]
    %v1198 = vld [vmem:[#allocation2 + $0x198] sm:$0xff]
    %v1199 = vld [vmem:[#allocation2 + $0x1a0] sm:$0xff]
    %v1200 = vld [vmem:[#allocation2 + $0x1a8] sm:$0xff]
    %v1201 = vld [vmem:[#allocation2 + $0x1b0] sm:$0xff]
    %v1202 = vld [vmem:[#allocation2 + $0x1b8] sm:$0xff]
    %v1203 = vld [vmem:[#allocation2 + $0x1c0] sm:$0xff]
    %v1204 = vld [vmem:[#allocation2 + $0x1c8] sm:$0xff]
    %v1205 = vld [vmem:[#allocation2 + $0x1d0] sm:$0xff]
    %v1206 = vld [vmem:[#allocation2 + $0x1d8] sm:$0xff]
    %v1207 = vld [vmem:[#allocation2 + $0x1e0] sm:$0xff]
    %v1208 = vld [vmem:[#allocation2 + $0x1e8] sm:$0xff]
    %v1209 = vld [vmem:[#allocation2 + $0x1f0] sm:$0xff]
    %v1210 = vld [vmem:[#allocation2 + $0x1f8] sm:$0xff]
    %v1211 = vld [vmem:[%s8] sm:$0x3]
    %v1213 = vlaneseq
    %v1214 = vshrl.u32 %v1213, 7
    %v1215 = vsub.s32 0, %v1214
    %v1216 = vrot.slane %v1211, %v1215
    %v1217 = vlaneseq
    %v1218 = vshrl.u32 %v1217, 7
    %v1219 = vsub.s32 1, %v1218
    %v1220 = vrot.slane %v1211, %v1219
    %1223 = vmatprep.subr.mxu0 %v1148
    %1224 = vmatpush1.msra.mxu0 %v1147
    %1225 = vmatprep.subr.mxu0 %v1150
    %1226 = vmatpush1.msra.mxu0 %v1149
    %1227 = vmatprep.subr.mxu0 %v1152
    %1228 = vmatpush1.msra.mxu0 %v1151
    %1229 = vmatprep.subr.mxu0 %v1154
    %1230 = vmatpush1.msra.mxu0 %v1153
    %1231 = vmatprep.subr.mxu0 %v1156
    %1232 = vmatpush1.msra.mxu0 %v1155
    %1233 = vmatprep.subr.mxu0 %v1158
    %1234 = vmatpush1.msra.mxu0 %v1157
    %1235 = vmatprep.subr.mxu0 %v1160
    %1236 = vmatpush1.msra.mxu0 %v1159
    %1237 = vmatprep.subr.mxu0 %v1162
    %1238 = vmatpush1.msra.mxu0 %v1161
    %1239 = vmatprep.subr.mxu0 %v1164
    %1240 = vmatpush1.msra.mxu0 %v1163
    %1241 = vmatprep.subr.mxu0 %v1166
    %1242 = vmatpush1.msra.mxu0 %v1165
    %1243 = vmatprep.subr.mxu0 %v1168
    %1244 = vmatpush1.msra.mxu0 %v1167
    %1245 = vmatprep.subr.mxu0 %v1170
    %1246 = vmatpush1.msra.mxu0 %v1169
    %1247 = vmatprep.subr.mxu0 %v1172
    %1248 = vmatpush1.msra.mxu0 %v1171
    %1249 = vmatprep.subr.mxu0 %v1174
    %1250 = vmatpush1.msra.mxu0 %v1173
    %1251 = vmatprep.subr.mxu0 %v1176
    %1252 = vmatpush1.msra.mxu0 %v1175
    %1253 = vmatprep.subr.mxu0 %v1178
    %1254 = vmatpush1.msra.mxu0 %v1177
    %1255 = vmatprep.subr.mxu0 %v1180
    %1256 = vmatpush1.msra.mxu0 %v1179
    %1257 = vmatprep.subr.mxu0 %v1182
    %1258 = vmatpush1.msra.mxu0 %v1181
    %1259 = vmatprep.subr.mxu0 %v1184
    %1260 = vmatpush1.msra.mxu0 %v1183
    %1261 = vmatprep.subr.mxu0 %v1186
    %1262 = vmatpush1.msra.mxu0 %v1185
    %1263 = vmatprep.subr.mxu0 %v1188
    %1264 = vmatpush1.msra.mxu0 %v1187
    %1265 = vmatprep.subr.mxu0 %v1190
    %1266 = vmatpush1.msra.mxu0 %v1189
    %1267 = vmatprep.subr.mxu0 %v1192
    %1268 = vmatpush1.msra.mxu0 %v1191
    %1269 = vmatprep.subr.mxu0 %v1194
    %1270 = vmatpush1.msra.mxu0 %v1193
    %1271 = vmatprep.subr.mxu0 %v1196
    %1272 = vmatpush1.msra.mxu0 %v1195
    %1273 = vmatprep.subr.mxu0 %v1198
    %1274 = vmatpush1.msra.mxu0 %v1197
    %1275 = vmatprep.subr.mxu0 %v1200
    %1276 = vmatpush1.msra.mxu0 %v1199
    %1277 = vmatprep.subr.mxu0 %v1202
    %1278 = vmatpush1.msra.mxu0 %v1201
    %1279 = vmatprep.subr.mxu0 %v1204
    %1280 = vmatpush1.msra.mxu0 %v1203
    %1281 = vmatprep.subr.mxu0 %v1206
    %1282 = vmatpush1.msra.mxu0 %v1205
    %1283 = vmatprep.subr.mxu0 %v1208
    %1284 = vmatpush1.msra.mxu0 %v1207
    %1285 = vmatprep.subr.mxu0 %v1210
    %1286 = vmatpush1.msra.mxu0 %v1209
    %1287 = vmatprep.mubr.f32.mxu0 %v1098
    %1288 = vmatmul.mubr.f32.gmra.mrb[0].mxu0 %v1097
    %v1289 = vpop.f32.mrb[0].mxu0
    %v1290 = vadd.f32 %v1216, %v1289
    %v1291 = vpop.f32.mrb[0].mxu0
    %v1292 = vadd.f32 %v1220, %v1291
    %1293 = vmatprep.mubr.f32.mxu0 %v1100
    %1294 = vmatmul.mubr.f32.gmra.mrb[0].mxu0 %v1099
    %v1295 = vpop.f32.mrb[0].mxu0
    %v1296 = vadd.f32 %v1216, %v1295
    %v1297 = vpop.f32.mrb[0].mxu0
    %v1298 = vadd.f32 %v1220, %v1297
    %1299 = vmatprep.mubr.f32.mxu0 %v1102
    %1300 = vmatmul.mubr.f32.gmra.mrb[0].mxu0 %v1101
    %v1301 = vpop.f32.mrb[0].mxu0
    %v1302 = vadd.f32 %v1216, %v1301
    %v1303 = vpop.f32.mrb[0].mxu0
    %v1304 = vadd.f32 %v1220, %v1303
    %1305 = vmatprep.mubr.f32.mxu0 %v1104
    %1306 = vmatmul.mubr.f32.gmra.mrb[0].mxu0 %v1103
    %v1307 = vpop.f32.mrb[0].mxu0
    %v1308 = vadd.f32 %v1216, %v1307
    %v1309 = vpop.f32.mrb[0].mxu0
    %v1310 = vadd.f32 %v1220, %v1309
    %1311 = vmatprep.mubr.f32.mxu0 %v1106
    %1312 = vmatmul.mubr.f32.gmra.mrb[0].mxu0 %v1105
    %v1313 = vpop.f32.mrb[0].mxu0
    %v1314 = vadd.f32 %v1216, %v1313
    %v1315 = vpop.f32.mrb[0].mxu0
    %v1316 = vadd.f32 %v1220, %v1315
    %1317 = vmatprep.mubr.f32.mxu0 %v1108
    %1318 = vmatmul.mubr.f32.gmra.mrb[0].mxu0 %v1107
    %v1319 = vpop.f32.mrb[0].mxu0
    %v1320 = vadd.f32 %v1216, %v1319
    %v1321 = vpop.f32.mrb[0].mxu0
    %v1322 = vadd.f32 %v1220, %v1321
    %1323 = vmatprep.mubr.f32.mxu0 %v1110
    %1324 = vmatmul.mubr.f32.gmra.mrb[0].mxu0 %v1109
    %v1325 = vpop.f32.mrb[0].mxu0
    %v1326 = vadd.f32 %v1216, %v1325
    %v1327 = vpop.f32.mrb[0].mxu0
    %v1328 = vadd.f32 %v1220, %v1327
    %1329 = vmatprep.mubr.f32.mxu0 %v1112
    %1330 = vmatmul.mubr.f32.gmra.mrb[0].mxu0 %v1111
    %v1331 = vpop.f32.mrb[0].mxu0
    %v1332 = vadd.f32 %v1216, %v1331
    %v1333 = vpop.f32.mrb[0].mxu0
    %v1334 = vadd.f32 %v1220, %v1333
    %1335 = vmatprep.mubr.f32.mxu0 %v1114
    %1336 = vmatmul.mubr.f32.gmra.mrb[0].mxu0 %v1113
    %v1337 = vpop.f32.mrb[0].mxu0
    %v1338 = vadd.f32 %v1216, %v1337
    %v1339 = vpop.f32.mrb[0].mxu0
    %v1340 = vadd.f32 %v1220, %v1339
    %1341 = vmatprep.mubr.f32.mxu0 %v1116
    %1342 = vmatmul.mubr.f32.gmra.mrb[0].mxu0 %v1115
    %v1343 = vpop.f32.mrb[0].mxu0
    %v1344 = vadd.f32 %v1216, %v1343
    %v1345 = vpop.f32.mrb[0].mxu0
    %v1346 = vadd.f32 %v1220, %v1345
    %1347 = vmatprep.mubr.f32.mxu0 %v1118
    %1348 = vmatmul.mubr.f32.gmra.mrb[0].mxu0 %v1117
    %v1349 = vpop.f32.mrb[0].mxu0
    %v1350 = vadd.f32 %v1216, %v1349
    %v1351 = vpop.f32.mrb[0].mxu0
    %v1352 = vadd.f32 %v1220, %v1351
    %1353 = vmatprep.mubr.f32.mxu0 %v1120
    %1354 = vmatmul.mubr.f32.gmra.mrb[0].mxu0 %v1119
    %v1355 = vpop.f32.mrb[0].mxu0
    %v1356 = vadd.f32 %v1216, %v1355
    %v1357 = vpop.f32.mrb[0].mxu0
    %v1358 = vadd.f32 %v1220, %v1357
    %1359 = vmatprep.mubr.f32.mxu0 %v1122
    %1360 = vmatmul.mubr.f32.gmra.mrb[0].mxu0 %v1121
    %v1361 = vpop.f32.mrb[0].mxu0
    %v1362 = vadd.f32 %v1216, %v1361
    %v1363 = vpop.f32.mrb[0].mxu0
    %v1364 = vadd.f32 %v1220, %v1363
    %1365 = vmatprep.mubr.f32.mxu0 %v1124
    %1366 = vmatmul.mubr.f32.gmra.mrb[0].mxu0 %v1123
    %v1367 = vpop.f32.mrb[0].mxu0
    %v1368 = vadd.f32 %v1216, %v1367
    %v1369 = vpop.f32.mrb[0].mxu0
    %v1370 = vadd.f32 %v1220, %v1369
    %1371 = vmatprep.mubr.f32.mxu0 %v1126
    %1372 = vmatmul.mubr.f32.gmra.mrb[0].mxu0 %v1125
    %v1373 = vpop.f32.mrb[0].mxu0
    %v1374 = vadd.f32 %v1216, %v1373
    %v1375 = vpop.f32.mrb[0].mxu0
    %v1376 = vadd.f32 %v1220, %v1375
    %1377 = vmatprep.mubr.f32.mxu0 %v1128
    %1378 = vmatmul.mubr.f32.gmra.mrb[0].mxu0 %v1127
    %v1379 = vpop.f32.mrb[0].mxu0
    %v1380 = vadd.f32 %v1216, %v1379
    %v1381 = vpop.f32.mrb[0].mxu0
    %v1382 = vadd.f32 %v1220, %v1381
    %1383 = vmatprep.mubr.f32.mxu0 %v1130
    %1384 = vmatmul.mubr.f32.gmra.mrb[0].mxu0 %v1129
    %v1385 = vpop.f32.mrb[0].mxu0
    %v1386 = vadd.f32 %v1216, %v1385
    %v1387 = vpop.f32.mrb[0].mxu0
    %v1388 = vadd.f32 %v1220, %v1387
    %1389 = vmatprep.mubr.f32.mxu0 %v1132
    %1390 = vmatmul.mubr.f32.gmra.mrb[0].mxu0 %v1131
    %v1391 = vpop.f32.mrb[0].mxu0
    %v1392 = vadd.f32 %v1216, %v1391
    %v1393 = vpop.f32.mrb[0].mxu0
    %v1394 = vadd.f32 %v1220, %v1393
    %1395 = vmatprep.mubr.f32.mxu0 %v1134
    %1396 = vmatmul.mubr.f32.gmra.mrb[0].mxu0 %v1133
    %v1397 = vpop.f32.mrb[0].mxu0
    %v1398 = vadd.f32 %v1216, %v1397
    %v1399 = vpop.f32.mrb[0].mxu0
    %v1400 = vadd.f32 %v1220, %v1399
    %1401 = vmatprep.mubr.f32.mxu0 %v1136
    %1402 = vmatmul.mubr.f32.gmra.mrb[0].mxu0 %v1135
    %v1403 = vpop.f32.mrb[0].mxu0
    %v1404 = vadd.f32 %v1216, %v1403
    %v1405 = vpop.f32.mrb[0].mxu0
    %v1406 = vadd.f32 %v1220, %v1405
    %1407 = vmatprep.mubr.f32.mxu0 %v1138
    %1408 = vmatmul.mubr.f32.gmra.mrb[0].mxu0 %v1137
    %v1409 = vpop.f32.mrb[0].mxu0
    %v1410 = vadd.f32 %v1216, %v1409
    %v1411 = vpop.f32.mrb[0].mxu0
    %v1412 = vadd.f32 %v1220, %v1411
    %1413 = vmatprep.mubr.f32.mxu0 %v1140
    %1414 = vmatmul.mubr.f32.gmra.mrb[0].mxu0 %v1139
    %v1415 = vpop.f32.mrb[0].mxu0
    %v1416 = vadd.f32 %v1216, %v1415
    %v1417 = vpop.f32.mrb[0].mxu0
    %v1418 = vadd.f32 %v1220, %v1417
    %1419 = vmatprep.mubr.f32.mxu0 %v1142
    %1420 = vmatmul.mubr.f32.gmra.mrb[0].mxu0 %v1141
    %v1421 = vpop.f32.mrb[0].mxu0
    %v1422 = vadd.f32 %v1216, %v1421
    %v1423 = vpop.f32.mrb[0].mxu0
    %v1424 = vadd.f32 %v1220, %v1423
    %1425 = vmatprep.mubr.f32.mxu0 %v1144
    %1426 = vmatmul.mubr.f32.gmra.mrb[0].mxu0 %v1143
    %v1427 = vpop.f32.mrb[0].mxu0
    %v1428 = vadd.f32 %v1216, %v1427
    %v1429 = vpop.f32.mrb[0].mxu0
    %v1430 = vadd.f32 %v1220, %v1429
    %1431 = vmatprep.mubr.f32.mxu0 %v1146
    %1432 = vmatmul.mubr.f32.gmra.mrb[0].mxu0 %v1145
    %v1433 = vpop.f32.mrb[0].mxu0
    %v1434 = vadd.f32 %v1216, %v1433
    %v1435 = vpop.f32.mrb[0].mxu0
    %v1436 = vadd.f32 %v1220, %v1435
    %1437 = vdwg.mxu0
    %v1438 = vmax.f32 %v1290, 0.0
    %v1439 = vmax.f32 %v1292, 0.0
    %v1440 = vmax.f32 %v1296, 0.0
    %v1441 = vmax.f32 %v1298, 0.0
    %v1442 = vmax.f32 %v1302, 0.0
    %v1443 = vmax.f32 %v1304, 0.0
    %v1444 = vmax.f32 %v1308, 0.0
    %v1445 = vmax.f32 %v1310, 0.0
    %v1446 = vmax.f32 %v1314, 0.0
    %v1447 = vmax.f32 %v1316, 0.0
    %v1448 = vmax.f32 %v1320, 0.0
    %v1449 = vmax.f32 %v1322, 0.0
    %v1450 = vmax.f32 %v1326, 0.0
    %v1451 = vmax.f32 %v1328, 0.0
    %v1452 = vmax.f32 %v1332, 0.0
    %v1453 = vmax.f32 %v1334, 0.0
    %v1454 = vmax.f32 %v1338, 0.0
    %v1455 = vmax.f32 %v1340, 0.0
    %v1456 = vmax.f32 %v1344, 0.0
    %v1457 = vmax.f32 %v1346, 0.0
    %v1458 = vmax.f32 %v1350, 0.0
    %v1459 = vmax.f32 %v1352, 0.0
    %v1460 = vmax.f32 %v1356, 0.0
    %v1461 = vmax.f32 %v1358, 0.0
    %v1462 = vmax.f32 %v1362, 0.0
    %v1463 = vmax.f32 %v1364, 0.0
    %v1464 = vmax.f32 %v1368, 0.0
    %v1465 = vmax.f32 %v1370, 0.0
    %v1466 = vmax.f32 %v1374, 0.0
    %v1467 = vmax.f32 %v1376, 0.0
    %v1468 = vmax.f32 %v1380, 0.0
    %v1469 = vmax.f32 %v1382, 0.0
    %v1470 = vmax.f32 %v1386, 0.0
    %v1471 = vmax.f32 %v1388, 0.0
    %v1472 = vmax.f32 %v1392, 0.0
    %v1473 = vmax.f32 %v1394, 0.0
    %v1474 = vmax.f32 %v1398, 0.0
    %v1475 = vmax.f32 %v1400, 0.0
    %v1476 = vmax.f32 %v1404, 0.0
    %v1477 = vmax.f32 %v1406, 0.0
    %v1478 = vmax.f32 %v1410, 0.0
    %v1479 = vmax.f32 %v1412, 0.0
    %v1480 = vmax.f32 %v1416, 0.0
    %v1481 = vmax.f32 %v1418, 0.0
    %v1482 = vmax.f32 %v1422, 0.0
    %v1483 = vmax.f32 %v1424, 0.0
    %v1484 = vmax.f32 %v1428, 0.0
    %v1485 = vmax.f32 %v1430, 0.0
    %v1486 = vmax.f32 %v1434, 0.0
    %v1487 = vmax.f32 %v1436, 0.0
    %v1488 = vld [vmem:[%s9] sm:$0xff]
    %v1489 = vld [vmem:[%s9 + $0x8] sm:$0xff]
    %v1490 = vld [vmem:[%s9 + $0x10] sm:$0xff]
    %v1491 = vld [vmem:[%s9 + $0x18] sm:$0xff]
    %v1492 = vld [vmem:[%s9 + $0x20] sm:$0xff]
    %v1493 = vld [vmem:[%s9 + $0x28] sm:$0xff]
    %v1494 = vld [vmem:[%s9 + $0x30] sm:$0xff]
    %v1495 = vld [vmem:[%s9 + $0x38] sm:$0xff]
    %v1496 = vld [vmem:[%s9 + $0x40] sm:$0xff]
    %v1497 = vld [vmem:[%s9 + $0x48] sm:$0xff]
    %v1498 = vld [vmem:[%s9 + $0x50] sm:$0xff]
    %v1499 = vld [vmem:[%s9 + $0x58] sm:$0xff]
    %v1500 = vld [vmem:[%s9 + $0x60] sm:$0xff]
    %v1501 = vld [vmem:[%s9 + $0x68] sm:$0xff]
    %v1502 = vld [vmem:[%s9 + $0x70] sm:$0xff]
    %v1503 = vld [vmem:[%s9 + $0x78] sm:$0xff]
    %v1504 = vld [vmem:[%s9 + $0x80] sm:$0xff]
    %v1505 = vld [vmem:[%s9 + $0x88] sm:$0xff]
    %v1506 = vld [vmem:[%s9 + $0x90] sm:$0xff]
    %v1507 = vld [vmem:[%s9 + $0x98] sm:$0xff]
    %v1508 = vld [vmem:[%s9 + $0xa0] sm:$0xff]
    %v1509 = vld [vmem:[%s9 + $0xa8] sm:$0xff]
    %v1510 = vld [vmem:[%s9 + $0xb0] sm:$0xff]
    %v1511 = vld [vmem:[%s9 + $0xb8] sm:$0xff]
    %v1512 = vld [vmem:[%s9 + $0xc0] sm:$0xff]
    %v1513 = vld [vmem:[%s9 + $0xc8] sm:$0xff]
    %v1514 = vld [vmem:[%s9 + $0xd0] sm:$0xff]
    %v1515 = vld [vmem:[%s9 + $0xd8] sm:$0xff]
    %v1516 = vld [vmem:[%s9 + $0xe0] sm:$0xff]
    %v1517 = vld [vmem:[%s9 + $0xe8] sm:$0xff]
    %v1518 = vld [vmem:[%s9 + $0xf0] sm:$0xff]
    %v1519 = vld [vmem:[%s9 + $0xf8] sm:$0xff]
    %v1520 = vld [vmem:[%s10] sm:$0x1]
    %v1522 = vlaneseq
    %v1523 = vshrl.u32 %v1522, 7
    %v1524 = vsub.s32 0, %v1523
    %v1525 = vrot.slane %v1520, %v1524
    %1527 = vmatprep.subr.mxu0 0.0
    %1528 = vmatpush1.msra.mxu0 %v1488
    %1529 = vmatprep.subr.mxu0 0.0
    %1530 = vmatpush1.msra.mxu0 %v1489
    %1531 = vmatprep.subr.mxu0 0.0
    %1532 = vmatpush1.msra.mxu0 %v1490
    %1533 = vmatprep.subr.mxu0 0.0
    %1534 = vmatpush1.msra.mxu0 %v1491
    %1535 = vmatprep.subr.mxu0 0.0
    %1536 = vmatpush1.msra.mxu0 %v1492
    %1537 = vmatprep.subr.mxu0 0.0
    %1538 = vmatpush1.msra.mxu0 %v1493
    %1539 = vmatprep.subr.mxu0 0.0
    %1540 = vmatpush1.msra.mxu0 %v1494
    %1541 = vmatprep.subr.mxu0 0.0
    %1542 = vmatpush1.msra.mxu0 %v1495
    %1543 = vmatprep.subr.mxu0 0.0
    %1544 = vmatpush1.msra.mxu0 %v1496
    %1545 = vmatprep.subr.mxu0 0.0
    %1546 = vmatpush1.msra.mxu0 %v1497
    %1547 = vmatprep.subr.mxu0 0.0
    %1548 = vmatpush1.msra.mxu0 %v1498
    %1549 = vmatprep.subr.mxu0 0.0
    %1550 = vmatpush1.msra.mxu0 %v1499
    %1551 = vmatprep.subr.mxu0 0.0
    %1552 = vmatpush1.msra.mxu0 %v1500
    %1553 = vmatprep.subr.mxu0 0.0
    %1554 = vmatpush1.msra.mxu0 %v1501
    %1555 = vmatprep.subr.mxu0 0.0
    %1556 = vmatpush1.msra.mxu0 %v1502
    %1557 = vmatprep.subr.mxu0 0.0
    %1558 = vmatpush1.msra.mxu0 %v1503
    %1559 = vmatprep.subr.mxu0 0.0
    %1560 = vmatpush1.msra.mxu0 %v1504
    %1561 = vmatprep.subr.mxu0 0.0
    %1562 = vmatpush1.msra.mxu0 %v1505
    %1563 = vmatprep.subr.mxu0 0.0
    %1564 = vmatpush1.msra.mxu0 %v1506
    %1565 = vmatprep.subr.mxu0 0.0
    %1566 = vmatpush1.msra.mxu0 %v1507
    %1567 = vmatprep.subr.mxu0 0.0
    %1568 = vmatpush1.msra.mxu0 %v1508
    %1569 = vmatprep.subr.mxu0 0.0
    %1570 = vmatpush1.msra.mxu0 %v1509
    %1571 = vmatprep.subr.mxu0 0.0
    %1572 = vmatpush1.msra.mxu0 %v1510
    %1573 = vmatprep.subr.mxu0 0.0
    %1574 = vmatpush1.msra.mxu0 %v1511
    %1575 = vmatprep.subr.mxu0 0.0
    %1576 = vmatpush1.msra.mxu0 %v1512
    %1577 = vmatprep.subr.mxu0 0.0
    %1578 = vmatpush1.msra.mxu0 %v1513
    %1579 = vmatprep.subr.mxu0 0.0
    %1580 = vmatpush1.msra.mxu0 %v1514
    %1581 = vmatprep.subr.mxu0 0.0
    %1582 = vmatpush1.msra.mxu0 %v1515
    %1583 = vmatprep.subr.mxu0 0.0
    %1584 = vmatpush1.msra.mxu0 %v1516
    %1585 = vmatprep.subr.mxu0 0.0
    %1586 = vmatpush1.msra.mxu0 %v1517
    %1587 = vmatprep.subr.mxu0 0.0
    %1588 = vmatpush1.msra.mxu0 %v1518
    %1589 = vmatprep.subr.mxu0 0.0
    %1590 = vmatpush1.msra.mxu0 %v1519
    %1591 = vmatprep.mubr.f32.mxu0 %v1439
    %1592 = vmatmul.mubr.f32.gmra.mrb[0].mxu0 %v1438
    %v1593 = vpop.f32.mrb[0].mxu0
    %v1594 = vadd.f32 %v1525, %v1593
    %v1595 = vpop.f32.mrb[0].mxu0
    %1596 = vmatprep.mubr.f32.mxu0 %v1441
    %1597 = vmatmul.mubr.f32.gmra.mrb[0].mxu0 %v1440
    %v1598 = vpop.f32.mrb[0].mxu0
    %v1599 = vadd.f32 %v1525, %v1598
    %v1600 = vpop.f32.mrb[0].mxu0
    %1601 = vmatprep.mubr.f32.mxu0 %v1443
    %1602 = vmatmul.mubr.f32.gmra.mrb[0].mxu0 %v1442
    %v1603 = vpop.f32.mrb[0].mxu0
    %v1604 = vadd.f32 %v1525, %v1603
    %v1605 = vpop.f32.mrb[0].mxu0
    %1606 = vmatprep.mubr.f32.mxu0 %v1445
    %1607 = vmatmul.mubr.f32.gmra.mrb[0].mxu0 %v1444
    %v1608 = vpop.f32.mrb[0].mxu0
    %v1609 = vadd.f32 %v1525, %v1608
    %v1610 = vpop.f32.mrb[0].mxu0
    %1611 = vmatprep.mubr.f32.mxu0 %v1447
    %1612 = vmatmul.mubr.f32.gmra.mrb[0].mxu0 %v1446
    %v1613 = vpop.f32.mrb[0].mxu0
    %v1614 = vadd.f32 %v1525, %v1613
    %v1615 = vpop.f32.mrb[0].mxu0
    %1616 = vmatprep.mubr.f32.mxu0 %v1449
    %1617 = vmatmul.mubr.f32.gmra.mrb[0].mxu0 %v1448
    %v1618 = vpop.f32.mrb[0].mxu0
    %v1619 = vadd.f32 %v1525, %v1618
    %v1620 = vpop.f32.mrb[0].mxu0
    %1621 = vmatprep.mubr.f32.mxu0 %v1451
    %1622 = vmatmul.mubr.f32.gmra.mrb[0].mxu0 %v1450
    %v1623 = vpop.f32.mrb[0].mxu0
    %v1624 = vadd.f32 %v1525, %v1623
    %v1625 = vpop.f32.mrb[0].mxu0
    %1626 = vmatprep.mubr.f32.mxu0 %v1453
    %1627 = vmatmul.mubr.f32.gmra.mrb[0].mxu0 %v1452
    %v1628 = vpop.f32.mrb[0].mxu0
    %v1629 = vadd.f32 %v1525, %v1628
    %v1630 = vpop.f32.mrb[0].mxu0
    %1631 = vmatprep.mubr.f32.mxu0 %v1455
    %1632 = vmatmul.mubr.f32.gmra.mrb[0].mxu0 %v1454
    %v1633 = vpop.f32.mrb[0].mxu0
    %v1634 = vadd.f32 %v1525, %v1633
    %v1635 = vpop.f32.mrb[0].mxu0
    %1636 = vmatprep.mubr.f32.mxu0 %v1457
    %1637 = vmatmul.mubr.f32.gmra.mrb[0].mxu0 %v1456
    %v1638 = vpop.f32.mrb[0].mxu0
    %v1639 = vadd.f32 %v1525, %v1638
    %v1640 = vpop.f32.mrb[0].mxu0
    %1641 = vmatprep.mubr.f32.mxu0 %v1459
    %1642 = vmatmul.mubr.f32.gmra.mrb[0].mxu0 %v1458
    %v1643 = vpop.f32.mrb[0].mxu0
    %v1644 = vadd.f32 %v1525, %v1643
    %v1645 = vpop.f32.mrb[0].mxu0
    %1646 = vmatprep.mubr.f32.mxu0 %v1461
    %1647 = vmatmul.mubr.f32.gmra.mrb[0].mxu0 %v1460
    %v1648 = vpop.f32.mrb[0].mxu0
    %v1649 = vadd.f32 %v1525, %v1648
    %v1650 = vpop.f32.mrb[0].mxu0
    %1651 = vmatprep.mubr.f32.mxu0 %v1463
    %1652 = vmatmul.mubr.f32.gmra.mrb[0].mxu0 %v1462
    %v1653 = vpop.f32.mrb[0].mxu0
    %v1654 = vadd.f32 %v1525, %v1653
    %v1655 = vpop.f32.mrb[0].mxu0
    %1656 = vmatprep.mubr.f32.mxu0 %v1465
    %1657 = vmatmul.mubr.f32.gmra.mrb[0].mxu0 %v1464
    %v1658 = vpop.f32.mrb[0].mxu0
    %v1659 = vadd.f32 %v1525, %v1658
    %v1660 = vpop.f32.mrb[0].mxu0
    %1661 = vmatprep.mubr.f32.mxu0 %v1467
    %1662 = vmatmul.mubr.f32.gmra.mrb[0].mxu0 %v1466
    %v1663 = vpop.f32.mrb[0].mxu0
    %v1664 = vadd.f32 %v1525, %v1663
    %v1665 = vpop.f32.mrb[0].mxu0
    %1666 = vmatprep.mubr.f32.mxu0 %v1469
    %1667 = vmatmul.mubr.f32.gmra.mrb[0].mxu0 %v1468
    %v1668 = vpop.f32.mrb[0].mxu0
    %v1669 = vadd.f32 %v1525, %v1668
    %v1670 = vpop.f32.mrb[0].mxu0
    %1671 = vmatprep.mubr.f32.mxu0 %v1471
    %1672 = vmatmul.mubr.f32.gmra.mrb[0].mxu0 %v1470
    %v1673 = vpop.f32.mrb[0].mxu0
    %v1674 = vadd.f32 %v1525, %v1673
    %v1675 = vpop.f32.mrb[0].mxu0
    %1676 = vmatprep.mubr.f32.mxu0 %v1473
    %1677 = vmatmul.mubr.f32.gmra.mrb[0].mxu0 %v1472
    %v1678 = vpop.f32.mrb[0].mxu0
    %v1679 = vadd.f32 %v1525, %v1678
    %v1680 = vpop.f32.mrb[0].mxu0
    %1681 = vmatprep.mubr.f32.mxu0 %v1475
    %1682 = vmatmul.mubr.f32.gmra.mrb[0].mxu0 %v1474
    %v1683 = vpop.f32.mrb[0].mxu0
    %v1684 = vadd.f32 %v1525, %v1683
    %v1685 = vpop.f32.mrb[0].mxu0
    %1686 = vmatprep.mubr.f32.mxu0 %v1477
    %1687 = vmatmul.mubr.f32.gmra.mrb[0].mxu0 %v1476
    %v1688 = vpop.f32.mrb[0].mxu0
    %v1689 = vadd.f32 %v1525, %v1688
    %v1690 = vpop.f32.mrb[0].mxu0
    %1691 = vmatprep.mubr.f32.mxu0 %v1479
    %1692 = vmatmul.mubr.f32.gmra.mrb[0].mxu0 %v1478
    %v1693 = vpop.f32.mrb[0].mxu0
    %v1694 = vadd.f32 %v1525, %v1693
    %v1695 = vpop.f32.mrb[0].mxu0
    %1696 = vmatprep.mubr.f32.mxu0 %v1481
    %1697 = vmatmul.mubr.f32.gmra.mrb[0].mxu0 %v1480
    %v1698 = vpop.f32.mrb[0].mxu0
    %v1699 = vadd.f32 %v1525, %v1698
    %v1700 = vpop.f32.mrb[0].mxu0
    %1701 = vmatprep.mubr.f32.mxu0 %v1483
    %1702 = vmatmul.mubr.f32.gmra.mrb[0].mxu0 %v1482
    %v1703 = vpop.f32.mrb[0].mxu0
    %v1704 = vadd.f32 %v1525, %v1703
    %v1705 = vpop.f32.mrb[0].mxu0
    %1706 = vmatprep.mubr.f32.mxu0 %v1485
    %1707 = vmatmul.mubr.f32.gmra.mrb[0].mxu0 %v1484
    %v1708 = vpop.f32.mrb[0].mxu0
    %v1709 = vadd.f32 %v1525, %v1708
    %v1710 = vpop.f32.mrb[0].mxu0
    %1711 = vmatprep.mubr.f32.mxu0 %v1487
    %1712 = vmatmul.mubr.f32.gmra.mrb[0].mxu0 %v1486
    %v1713 = vpop.f32.mrb[0].mxu0
    %v1714 = vadd.f32 %v1525, %v1713
    %v1715 = vpop.f32.mrb[0].mxu0
    %1716 = vdwg.mxu0
    %1717 = vst.msk [vmem:[%s11] sm:$0xff] %vm403, %v1594
    %1718 = vst.msk [vmem:[%s11 + $0x8] sm:$0xff] %vm403, %v1599
    %1719 = vst.msk [vmem:[%s11 + $0x10] sm:$0xff] %vm403, %v1604
    %1720 = vst.msk [vmem:[%s11 + $0x18] sm:$0xff] %vm403, %v1609
    %1721 = vst.msk [vmem:[%s11 + $0x20] sm:$0xff] %vm403, %v1614
    %1722 = vst.msk [vmem:[%s11 + $0x28] sm:$0xff] %vm403, %v1619
    %1723 = vst.msk [vmem:[%s11 + $0x30] sm:$0xff] %vm403, %v1624
    %1724 = vst.msk [vmem:[%s11 + $0x38] sm:$0xff] %vm403, %v1629
    %1725 = vst.msk [vmem:[%s11 + $0x40] sm:$0xff] %vm403, %v1634
    %1726 = vst.msk [vmem:[%s11 + $0x48] sm:$0xff] %vm403, %v1639
    %1727 = vst.msk [vmem:[%s11 + $0x50] sm:$0xff] %vm403, %v1644
    %1728 = vst.msk [vmem:[%s11 + $0x58] sm:$0xff] %vm403, %v1649
    %1729 = vst.msk [vmem:[%s11 + $0x60] sm:$0xff] %vm403, %v1654
    %1730 = vst.msk [vmem:[%s11 + $0x68] sm:$0xff] %vm403, %v1659
    %1731 = vst.msk [vmem:[%s11 + $0x70] sm:$0xff] %vm403, %v1664
    %1732 = vst.msk [vmem:[%s11 + $0x78] sm:$0xff] %vm403, %v1669
    %1733 = vst.msk [vmem:[%s11 + $0x80] sm:$0xff] %vm403, %v1674
    %1734 = vst.msk [vmem:[%s11 + $0x88] sm:$0xff] %vm403, %v1679
    %1735 = vst.msk [vmem:[%s11 + $0x90] sm:$0xff] %vm403, %v1684
    %1736 = vst.msk [vmem:[%s11 + $0x98] sm:$0xff] %vm403, %v1689
    %1737 = vst.msk [vmem:[%s11 + $0xa0] sm:$0xff] %vm403, %v1694
    %1738 = vst.msk [vmem:[%s11 + $0xa8] sm:$0xff] %vm403, %v1699
    %1739 = vst.msk [vmem:[%s11 + $0xb0] sm:$0xff] %vm403, %v1704
    %1740 = vst.msk [vmem:[%s11 + $0xb8] sm:$0xff] %vm403, %v1709
    %1741 = vst.msk [vmem:[%s11 + $0xc0] sm:$0xff] %vm403, %v1714
    // Predicated region
    $region50: #{_dynamic_model_forward_impl.1} parent=1 // pred_check
      _
    $region51: #{_dynamic_model_forward_impl.1} parent=1 // pred_check_branch
      %1743 = sbr.rel (0) target = $region53
    $region52: #{_dynamic_model_forward_impl.1} parent=1 // pred_region
      _
    $region53: #{_dynamic_model_forward_impl.1} parent=1 // pred_fallthru
      _
    // Predicated region
    $region54: #{_dynamic_model_forward_impl.1} parent=1 // pred_check
      _
    $region55: #{_dynamic_model_forward_impl.1} parent=1 // pred_check_branch
      %1745 = sbr.rel (0) target = $region57
    $region56: #{_dynamic_model_forward_impl.1} parent=1 // pred_region
      _
    $region57: #{_dynamic_model_forward_impl.1} parent=1 // pred_fallthru
      _
    %1746 = vsyncpa [#allocation3], 1

</llo_original>
